<compile_context>
chip_gen: v6e
topology: v6e:2x2x1
jax: 0.10.0
libtpu: 0.0.40
codegen_flags: <defaults>
</compile_context>

<pallas_src>
import functools

import jax
import jax.numpy as jnp
from jax.experimental import pallas as pl
from jax.experimental.pallas import tpu as pltpu


# VMEM budget (bytes) below which the bf16 Z operand is kept fully resident.
_Z_RESIDENT_BYTES = 4 * 1024 * 1024


# ------------------------------ Pallas kernels -------------------------------

def _prop_kernel(a_ref, z_ref, b_ref, o_ref, acc_ref, *, apply_relu, z_resident):
    """Propagation layer:  o[i] = act( sum_k A[i,k] @ Z[k] + b ).

    grid = (row blocks i, reduction blocks k); acc_ref is an f32 accumulator
    resident across the k axis.  Z = H @ W is precomputed in the wrapper.
    """
    k = pl.program_id(1)
    tk_blk = a_ref.shape[1]

    @pl.when(k == 0)
    def _init():
        acc_ref[...] = jnp.zeros_like(acc_ref)

    if z_resident:
        start = pl.multiple_of(k * tk_blk, tk_blk)
        z = z_ref[pl.ds(start, tk_blk), :]          # slice the VMEM-resident Z
    else:
        z = z_ref[...]                              # (tk, f_out) reduction block

    acc_ref[...] += jnp.dot(a_ref[...], z, preferred_element_type=jnp.float32)

    @pl.when(k == pl.num_programs(1) - 1)
    def _finalize():
        y = acc_ref[...] + b_ref[...]               # f32 epilogue (VPU)
        if apply_relu:
            y = jnp.maximum(y, 0.0)
        o_ref[...] = y.astype(o_ref.dtype)


def _out_kernel(a_ref, h_ref, w3t_ref, b3_ref, o_ref, acc_ref, *, z_resident):
    """Output layer, re-associated:  y[i] = (sum_k A[i,k] @ H[k]) @ w3 + b3.

    The final F2 -> 1 projection is a VPU reduce in the finalize step instead
    of a lane-width-1 MXU matvec.
    """
    k = pl.program_id(1)
    tk_blk = a_ref.shape[1]

    @pl.when(k == 0)
    def _init():
        acc_ref[...] = jnp.zeros_like(acc_ref)

    if z_resident:
        start = pl.multiple_of(k * tk_blk, tk_blk)
        h = h_ref[pl.ds(start, tk_blk), :]
    else:
        h = h_ref[...]

    acc_ref[...] += jnp.dot(a_ref[...], h, preferred_element_type=jnp.float32)

    @pl.when(k == pl.num_programs(1) - 1)
    def _finalize():
        w = w3t_ref[...]                                            # (1, F2) f32
        y = jnp.sum(acc_ref[...] * w, axis=-1, keepdims=True) + b3_ref[...]
        o_ref[...] = y                                              # (tm, 1) f32


# ------------------------------ pallas_call wrappers --------------------------

def _z_spec(npad, f_out, tk, z_resident):
    if z_resident:
        return pl.BlockSpec((npad, f_out), lambda i, k: (0, 0))     # resident
    return pl.BlockSpec((tk, f_out), lambda i, k: (k, 0))           # per-k block


def _propagate(a_hat, z, b, *, apply_relu, out_dtype, tm, tk):
    npad = a_hat.shape[0]
    f_out = z.shape[1]
    z_resident = int(z.size) * z.dtype.itemsize <= _Z_RESIDENT_BYTES
    kernel = functools.partial(_prop_kernel, apply_relu=apply_relu,
                               z_resident=z_resident)
    return pl.pallas_call(
        kernel,
        out_shape=jax.ShapeDtypeStruct((npad, f_out), out_dtype),
        grid_spec=pltpu.PrefetchScalarGridSpec(
            num_scalar_prefetch=0,
            grid=(npad // tm, npad // tk),
            in_specs=[
                pl.BlockSpec((tm, tk), lambda i, k: (i, k)),        # A_hat tile
                _z_spec(npad, f_out, tk, z_resident),               # Z (bf16)
                pl.BlockSpec((1, f_out), lambda i, k: (0, 0)),      # bias (f32)
            ],
            out_specs=pl.BlockSpec((tm, f_out), lambda i, k: (i, 0)),
            scratch_shapes=[pltpu.VMEM((tm, f_out), jnp.float32)],
        ),
        compiler_params=pltpu.CompilerParams(
            dimension_semantics=("parallel", "arbitrary")),
    )(a_hat, z, b)


def _propagate_out(a_hat, h2, w3t, b3, *, tm, tk):
    npad = a_hat.shape[0]
    f2 = h2.shape[1]
    z_resident = int(h2.size) * h2.dtype.itemsize <= _Z_RESIDENT_BYTES
    kernel = functools.partial(_out_kernel, z_resident=z_resident)
    return pl.pallas_call(
        kernel,
        out_shape=jax.ShapeDtypeStruct((npad, 1), jnp.float32),
        grid_spec=pltpu.PrefetchScalarGridSpec(
            num_scalar_prefetch=0,
            grid=(npad // tm, npad // tk),
            in_specs=[
                pl.BlockSpec((tm, tk), lambda i, k: (i, k)),        # A_hat tile
                _z_spec(npad, f2, tk, z_resident),                  # h2 (bf16)
                pl.BlockSpec((1, f2), lambda i, k: (0, 0)),         # w3^T (f32)
                pl.BlockSpec((1, 1), lambda i, k: (0, 0)),          # b3
            ],
            out_specs=pl.BlockSpec((tm, 1), lambda i, k: (i, 0)),
            scratch_shapes=[pltpu.VMEM((tm, f2), jnp.float32)],
        ),
        compiler_params=pltpu.CompilerParams(
            dimension_semantics=("parallel", "arbitrary")),
    )(a_hat, h2, w3t, b3)


# ------------------------------ tiling helpers --------------------------------

def _round_up(x, m):
    return ((x + m - 1) // m) * m


def _largest_tile(npad, cap):
    """Largest multiple of 128 that is <= cap and divides npad exactly."""
    t = min(cap, npad)
    t -= t % 128
    t = max(t, 128)
    while npad % t != 0:
        t -= 128
    return t


def _choose_tiling(n, tm_req, tk_req):
    """Pick (npad, tm, tk) so both tiles divide npad (no tail truncation),
    padding never inflates dense work by more than ~25%, and the row grid has
    >= 2 blocks whenever possible (megacore sharding on v7x)."""
    assert tm_req % 128 == 0 and tk_req % 128 == 0
    npad = _round_up(n, 128)
    for align in (512, 256):
        cand = _round_up(n, align)
        if cand * cand * 4 <= npad * npad * 5:      # <= ~25% extra O(N^2) work
            npad = cand
            break
    tk = _largest_tile(npad, tk_req)
    tm = _largest_tile(npad, min(tm_req, max(128, npad // 2)))
    return npad, tm, tk


# ------------------------------ full forward ----------------------------------

def gcn3_forward(x, edge_index, edge_weight, params, *, tm=512, tk=512):
    """Full 3-layer GCN forward (inference).  tm/tk: requested tile sizes."""
    n = x.shape[0]
    w1, b1, w2, b2, w3, b3 = params
    npad, tm, tk = _choose_tiling(n, tm, tk)

    # A_hat is built directly as a padded bf16 buffer: no extra N^2 cast/pad
    # pass.  Padded rows/cols are zero so they never influence real nodes.
    a_hat = build_normalized_adjacency(edge_index, edge_weight, n, npad,
                                       dtype=jnp.bfloat16)
    x_p = jnp.pad(x, ((0, npad - n), (0, 0)))

    # Z = H @ W hoisted out of the propagation kernels (tiny f32 XLA dots).
    z1 = jnp.dot(x_p, w1).astype(jnp.bfloat16)
    h1 = _propagate(a_hat, z1, b1, apply_relu=True,
                    out_dtype=jnp.bfloat16, tm=tm, tk=tk)
    # dropout(p=0.2): identity in inference
    z2 = jnp.dot(h1.astype(jnp.float32), w2).astype(jnp.bfloat16)
    h2 = _propagate(a_hat, z2, b2, apply_relu=True,
                    out_dtype=jnp.bfloat16, tm=tm, tk=tk)
    # dropout(p=0.4): identity in inference
    y = _propagate_out(a_hat, h2, jnp.transpose(w3), b3, tm=tm, tk=tk)
    return y[:n, 0]                                  # == x.view(-1)


# ------------------------------ plain-JAX glue --------------------------------

def build_normalized_adjacency(edge_index, edge_weight, num_nodes,
                               num_padded=None, dtype=jnp.float32):
    """Dense D^{-1/2}(A + I_remaining)D^{-1/2}, A[target, source] (PyG gcn_norm),
    built directly at padded size in the requested dtype (single O(N^2) pass).

    Matches add_remaining_self_loops: a unit self-loop is added only to real
    nodes that do not already have one.  Padded rows/cols stay exactly zero.
    """
    npad = num_nodes if num_padded is None else num_padded
    src = edge_index[0]
    tgt = edge_index[1]
    if edge_weight is None:
        edge_weight = jnp.ones((edge_index.shape[1],), jnp.float32)
    a = jnp.zeros((npad, npad), jnp.float32)
    a = a.at[tgt, src].add(edge_weight)
    has_loop = jnp.zeros((npad,), jnp.int32).at[src].add(
        (src == tgt).astype(jnp.int32))
    real = jnp.arange(npad) < num_nodes
    a = a + jnp.diag(jnp.where((has_loop > 0) | (~real), 0.0, 1.0))
    deg = a.sum(axis=1)                               # weighted in-degree
    d_inv_sqrt = jnp.where(deg > 0, jax.lax.rsqrt(deg), 0.0)
    return (d_inv_sqrt[:, None] * a * d_inv_sqrt[None, :]).astype(dtype)


def glorot(key, shape):
    fan_in, fan_out = shape
    limit = jnp.sqrt(6.0 / (fan_in + fan_out))
    return jax.random.uniform(key, shape, jnp.float32, -limit, limit)


def init_params(key, in_channels, h1=64, h2=32):
    k1, k2, k3 = jax.random.split(key, 3)
    return (glorot(k1, (in_channels, h1)), jnp.zeros((1, h1), jnp.float32),
            glorot(k2, (h1, h2)), jnp.zeros((1, h2), jnp.float32),
            glorot(k3, (h2, 1)), jnp.zeros((1, 1), jnp.float32))


def gcn3_reference_f32(x, edge_index, edge_weight, params):
    """Pure f32 reference (true module semantics, inference path)."""
    n = x.shape[0]
    a = build_normalized_adjacency(edge_index, edge_weight, n, n, jnp.float32)
    w1, b1, w2, b2, w3, b3 = params
    h = jnp.maximum(a @ (x @ w1) + b1, 0.0)
    h = jnp.maximum(a @ (h @ w2) + b2, 0.0)
    return (a @ (h @ w3) + b3).reshape(-1)


def gcn3_reference_matched(x, edge_index, edge_weight, params):
    """Reference with the same bf16-A / bf16-Z / f32-accumulate mixed precision
    the kernels use (Z computed in f32 then cast to bf16, layer-3 reassociated)."""
    n = x.shape[0]
    a = build_normalized_adjacency(edge_index, edge_weight, n, n, jnp.bfloat16)
    w1, b1, w2, b2, w3, b3 = params

    def prop(z_f32, b, relu):
        y = jnp.dot(a, z_f32.astype(jnp.bfloat16),
                    preferred_element_type=jnp.float32) + b
        return jnp.maximum(y, 0.0) if relu else y

    h1 = prop(jnp.dot(x, w1), b1, True).astype(jnp.bfloat16)
    h2 = prop(jnp.dot(h1.astype(jnp.float32), w2), b2, True).astype(jnp.bfloat16)
    p = jnp.dot(a, h2, preferred_element_type=jnp.float32)
    y = jnp.sum(p * jnp.transpose(w3), axis=-1, keepdims=True) + b3
    return y.reshape(-1)


if __name__ == "__main__":
    N = 256            # number of graph nodes
    IN_CHANNELS = 16   # input feature dim
    E = 1024           # number of edges

    root = jax.random.PRNGKey(0)
    k_x, k_src, k_tgt, k_w, k_params = jax.random.split(root, 5)

    x = jax.random.normal(k_x, (N, IN_CHANNELS), jnp.float32)
    edge_index = jnp.stack([
        jax.random.randint(k_src, (E,), 0, N),
        jax.random.randint(k_tgt, (E,), 0, N),
    ], axis=0)
    edge_weight = jax.random.uniform(k_w, (E,), jnp.float32, 0.5, 1.5)

    params = init_params(k_params, IN_CHANNELS, 64, 32)

    fwd = jax.jit(lambda xx, ei, ew: gcn3_forward(xx, ei, ew, params))
    out = jax.block_until_ready(fwd(x, edge_index, edge_weight))

    assert out.shape == (N,), f"bad output shape: {out.shape}"

    ref_matched = gcn3_reference_matched(x, edge_index, edge_weight, params)
    assert jnp.allclose(out, ref_matched, rtol=1e-2, atol=1e-2), \
        "mismatch vs bf16-matched reference"

    ref_f32 = gcn3_reference_f32(x, edge_index, edge_weight, params)
    assert jnp.allclose(out, ref_f32, rtol=1e-1, atol=1e-1), \
        "mismatch vs f32 reference (bf16 approximation drifted too far)"

    print("KERNEL_OK")
</pallas_src>

<mosaic_0001>
module attributes {stable_mosaic.version = 11 : i64} {
  func.func private @main(%arg0: i32) attributes {dimension_semantics = [#tpu.dimension_semantics<core_parallel>], iteration_bounds = array<i64: 2>, tpu.core_type = #tpu.core_type<sc_scalar_subcore>, window_params = []} {
    return
  }
}

module attributes {stable_mosaic.version = 11 : i64} {
  func.func private @main(%arg0: i32) attributes {dimension_semantics = [#tpu.dimension_semantics<core_parallel>], iteration_bounds = array<i64: 2>, tpu.core_type = #tpu.core_type<sc_scalar_subcore>, window_params = []} {
    return
  }
}

module attributes {stable_mosaic.version = 11 : i64} {
  func.func @_prop_kernel(%arg0: i32, %arg1: i32, %arg2: memref<128x256xbf16, #tpu.memory_space<vmem>>, %arg3: memref<256x64xbf16, #tpu.memory_space<vmem>>, %arg4: memref<1x64xf32, #tpu.memory_space<vmem>>, %arg5: memref<128x64xbf16, #tpu.memory_space<vmem>>, %arg6: memref<128x64xf32, #tpu.memory_space<vmem>>) attributes {dimension_semantics = [#tpu.dimension_semantics<parallel>, #tpu.dimension_semantics<arbitrary>], iteration_bounds = array<i64: 2, 1>, scalar_prefetch = 0 : i64, scratch_operands = 1 : i64, tpu.core_type = #tpu.core_type<tc>, window_params = [{transform_indices = @transform_0, window_bounds = array<i64: 128, 256>}, {pipeline_mode = #tpu.pipeline_mode<synchronous>, transform_indices = @transform_1, window_bounds = array<i64: 256, 64>}, {pipeline_mode = #tpu.pipeline_mode<synchronous>, transform_indices = @transform_2, window_bounds = array<i64: 1, 64>}, {transform_indices = @transform_3, window_bounds = array<i64: 128, 64>}]} {
    %c0_i32 = arith.constant 0 : i32
    %0 = arith.cmpi eq, %arg1, %c0_i32 : i32
    %1 = arith.extui %0 : i1 to i32
    %c0_i32_0 = arith.constant 0 : i32
    %2 = arith.cmpi ne, %1, %c0_i32_0 : i32
    scf.if %2 {
      %cst_9 = arith.constant 0.000000e+00 : f32
      %15 = vector.broadcast %cst_9 : f32 to vector<128x64xf32>
      %c0_10 = arith.constant 0 : index
      %c0_11 = arith.constant 0 : index
      %16 = vector.load %arg6[%c0_10, %c0_11] : memref<128x64xf32, #tpu.memory_space<vmem>>, vector<128x64xf32>
      tpu.vector_store %arg6[%c0_10, %c0_11], %15 {strides = array<i32>} : memref<128x64xf32, #tpu.memory_space<vmem>>, vector<128x64xf32>,
    } else {
    }
    %c256_i32 = arith.constant 256 : i32
    %3 = arith.muli %arg1, %c256_i32 : i32
    %4 = tpu.assume_multiple %3, 256 : i32
    %5 = arith.index_cast %4 : i32 to index
    %c0 = arith.constant 0 : index
    %6 = vector.load %arg3[%5, %c0] : memref<256x64xbf16, #tpu.memory_space<vmem>>, vector<256x64xbf16>
    %c0_1 = arith.constant 0 : index
    %c0_2 = arith.constant 0 : index
    %7 = vector.load %arg6[%c0_1, %c0_2] : memref<128x64xf32, #tpu.memory_space<vmem>>, vector<128x64xf32>
    %c0_3 = arith.constant 0 : index
    %c0_4 = arith.constant 0 : index
    %8 = vector.load %arg2[%c0_3, %c0_4] : memref<128x256xbf16, #tpu.memory_space<vmem>>, vector<128x256xbf16>
    %cst = arith.constant dense<0.000000e+00> : vector<128x64xf32>
    %9 = tpu.matmul %8, %6, %cst {dimension_numbers = #tpu.dot_dimension_numbers<[1], [0], [0], [1], [0, 0, 1, 1], [], []>} : vector<128x256xbf16>, vector<256x64xbf16>, vector<128x64xf32> -> vector<128x64xf32>
    %10 = arith.addf %7, %9 : vector<128x64xf32>
    %c0_5 = arith.constant 0 : index
    %c0_6 = arith.constant 0 : index
    %11 = vector.load %arg6[%c0_5, %c0_6] : memref<128x64xf32, #tpu.memory_space<vmem>>, vector<128x64xf32>
    tpu.vector_store %arg6[%c0_5, %c0_6], %10 {strides = array<i32>} : memref<128x64xf32, #tpu.memory_space<vmem>>, vector<128x64xf32>,
    %c0_i32_7 = arith.constant 0 : i32
    %12 = arith.cmpi eq, %arg1, %c0_i32_7 : i32
    %13 = arith.extui %12 : i1 to i32
    %c0_i32_8 = arith.constant 0 : i32
    %14 = arith.cmpi ne, %13, %c0_i32_8 : i32
    scf.if %14 {
      %c0_9 = arith.constant 0 : index
      %c0_10 = arith.constant 0 : index
      %15 = vector.load %arg6[%c0_9, %c0_10] : memref<128x64xf32, #tpu.memory_space<vmem>>, vector<128x64xf32>
      %c0_11 = arith.constant 0 : index
      %c0_12 = arith.constant 0 : index
      %16 = vector.load %arg4[%c0_11, %c0_12] : memref<1x64xf32, #tpu.memory_space<vmem>>, vector<1x64xf32>
      %17 = vector.broadcast %16 : vector<1x64xf32> to vector<128x64xf32>
      %18 = arith.addf %15, %17 : vector<128x64xf32>
      %cst_13 = arith.constant 0.000000e+00 : f32
      %19 = vector.broadcast %cst_13 : f32 to vector<128x64xf32>
      %20 = arith.maximumf %18, %19 : vector<128x64xf32>
      %21 = arith.truncf %20 : vector<128x64xf32> to vector<128x64xbf16>
      %c0_14 = arith.constant 0 : index
      %c0_15 = arith.constant 0 : index
      %22 = vector.load %arg5[%c0_14, %c0_15] : memref<128x64xbf16, #tpu.memory_space<vmem>>, vector<128x64xbf16>
      tpu.vector_store %arg5[%c0_14, %c0_15], %21 {strides = array<i32>} : memref<128x64xbf16, #tpu.memory_space<vmem>>, vector<128x64xbf16>,
    } else {
    }
    return
  }
  func.func @transform_0(%arg0: i32, %arg1: i32) -> (i32, i32) {
    %c0_i32 = arith.constant 0 : i32
    return %arg0, %arg1 : i32, i32
  }
  func.func @transform_1(%arg0: i32, %arg1: i32) -> (i32, i32) {
    %c0_i32 = arith.constant 0 : i32
    %c0_i32_0 = arith.constant 0 : i32
    %c0_i32_1 = arith.constant 0 : i32
    return %c0_i32, %c0_i32_0 : i32, i32
  }
  func.func @transform_2(%arg0: i32, %arg1: i32) -> (i32, i32) {
    %c0_i32 = arith.constant 0 : i32
    %c0_i32_0 = arith.constant 0 : i32
    %c0_i32_1 = arith.constant 0 : i32
    return %c0_i32, %c0_i32_0 : i32, i32
  }
  func.func @transform_3(%arg0: i32, %arg1: i32) -> (i32, i32) {
    %c0_i32 = arith.constant 0 : i32
    %c0_i32_0 = arith.constant 0 : i32
    return %arg0, %c0_i32 : i32, i32
  }
}

module attributes {stable_mosaic.version = 11 : i64} {
  func.func @_prop_kernel(%arg0: i32, %arg1: i32, %arg2: memref<128x256xbf16, #tpu.memory_space<vmem>>, %arg3: memref<256x32xbf16, #tpu.memory_space<vmem>>, %arg4: memref<1x32xf32, #tpu.memory_space<vmem>>, %arg5: memref<128x32xbf16, #tpu.memory_space<vmem>>, %arg6: memref<128x32xf32, #tpu.memory_space<vmem>>) attributes {dimension_semantics = [#tpu.dimension_semantics<parallel>, #tpu.dimension_semantics<arbitrary>], iteration_bounds = array<i64: 2, 1>, scalar_prefetch = 0 : i64, scratch_operands = 1 : i64, tpu.core_type = #tpu.core_type<tc>, window_params = [{transform_indices = @transform_0, window_bounds = array<i64: 128, 256>}, {pipeline_mode = #tpu.pipeline_mode<synchronous>, transform_indices = @transform_1, window_bounds = array<i64: 256, 32>}, {pipeline_mode = #tpu.pipeline_mode<synchronous>, transform_indices = @transform_2, window_bounds = array<i64: 1, 32>}, {transform_indices = @transform_3, window_bounds = array<i64: 128, 32>}]} {
    %c0_i32 = arith.constant 0 : i32
    %0 = arith.cmpi eq, %arg1, %c0_i32 : i32
    %1 = arith.extui %0 : i1 to i32
    %c0_i32_0 = arith.constant 0 : i32
    %2 = arith.cmpi ne, %1, %c0_i32_0 : i32
    scf.if %2 {
      %cst_9 = arith.constant 0.000000e+00 : f32
      %15 = vector.broadcast %cst_9 : f32 to vector<128x32xf32>
      %c0_10 = arith.constant 0 : index
      %c0_11 = arith.constant 0 : index
      %16 = vector.load %arg6[%c0_10, %c0_11] : memref<128x32xf32, #tpu.memory_space<vmem>>, vector<128x32xf32>
      tpu.vector_store %arg6[%c0_10, %c0_11], %15 {strides = array<i32>} : memref<128x32xf32, #tpu.memory_space<vmem>>, vector<128x32xf32>,
    } else {
    }
    %c256_i32 = arith.constant 256 : i32
    %3 = arith.muli %arg1, %c256_i32 : i32
    %4 = tpu.assume_multiple %3, 256 : i32
    %5 = arith.index_cast %4 : i32 to index
    %c0 = arith.constant 0 : index
    %6 = vector.load %arg3[%5, %c0] : memref<256x32xbf16, #tpu.memory_space<vmem>>, vector<256x32xbf16>
    %c0_1 = arith.constant 0 : index
    %c0_2 = arith.constant 0 : index
    %7 = vector.load %arg6[%c0_1, %c0_2] : memref<128x32xf32, #tpu.memory_space<vmem>>, vector<128x32xf32>
    %c0_3 = arith.constant 0 : index
    %c0_4 = arith.constant 0 : index
    %8 = vector.load %arg2[%c0_3, %c0_4] : memref<128x256xbf16, #tpu.memory_space<vmem>>, vector<128x256xbf16>
    %cst = arith.constant dense<0.000000e+00> : vector<128x32xf32>
    %9 = tpu.matmul %8, %6, %cst {dimension_numbers = #tpu.dot_dimension_numbers<[1], [0], [0], [1], [0, 0, 1, 1], [], []>} : vector<128x256xbf16>, vector<256x32xbf16>, vector<128x32xf32> -> vector<128x32xf32>
    %10 = arith.addf %7, %9 : vector<128x32xf32>
    %c0_5 = arith.constant 0 : index
    %c0_6 = arith.constant 0 : index
    %11 = vector.load %arg6[%c0_5, %c0_6] : memref<128x32xf32, #tpu.memory_space<vmem>>, vector<128x32xf32>
    tpu.vector_store %arg6[%c0_5, %c0_6], %10 {strides = array<i32>} : memref<128x32xf32, #tpu.memory_space<vmem>>, vector<128x32xf32>,
    %c0_i32_7 = arith.constant 0 : i32
    %12 = arith.cmpi eq, %arg1, %c0_i32_7 : i32
    %13 = arith.extui %12 : i1 to i32
    %c0_i32_8 = arith.constant 0 : i32
    %14 = arith.cmpi ne, %13, %c0_i32_8 : i32
    scf.if %14 {
      %c0_9 = arith.constant 0 : index
      %c0_10 = arith.constant 0 : index
      %15 = vector.load %arg6[%c0_9, %c0_10] : memref<128x32xf32, #tpu.memory_space<vmem>>, vector<128x32xf32>
      %c0_11 = arith.constant 0 : index
      %c0_12 = arith.constant 0 : index
      %16 = vector.load %arg4[%c0_11, %c0_12] : memref<1x32xf32, #tpu.memory_space<vmem>>, vector<1x32xf32>
      %17 = vector.broadcast %16 : vector<1x32xf32> to vector<128x32xf32>
      %18 = arith.addf %15, %17 : vector<128x32xf32>
      %cst_13 = arith.constant 0.000000e+00 : f32
      %19 = vector.broadcast %cst_13 : f32 to vector<128x32xf32>
      %20 = arith.maximumf %18, %19 : vector<128x32xf32>
      %21 = arith.truncf %20 : vector<128x32xf32> to vector<128x32xbf16>
      %c0_14 = arith.constant 0 : index
      %c0_15 = arith.constant 0 : index
      %22 = vector.load %arg5[%c0_14, %c0_15] : memref<128x32xbf16, #tpu.memory_space<vmem>>, vector<128x32xbf16>
      tpu.vector_store %arg5[%c0_14, %c0_15], %21 {strides = array<i32>} : memref<128x32xbf16, #tpu.memory_space<vmem>>, vector<128x32xbf16>,
    } else {
    }
    return
  }
  func.func @transform_0(%arg0: i32, %arg1: i32) -> (i32, i32) {
    %c0_i32 = arith.constant 0 : i32
    return %arg0, %arg1 : i32, i32
  }
  func.func @transform_1(%arg0: i32, %arg1: i32) -> (i32, i32) {
    %c0_i32 = arith.constant 0 : i32
    %c0_i32_0 = arith.constant 0 : i32
    %c0_i32_1 = arith.constant 0 : i32
    return %c0_i32, %c0_i32_0 : i32, i32
  }
  func.func @transform_2(%arg0: i32, %arg1: i32) -> (i32, i32) {
    %c0_i32 = arith.constant 0 : i32
    %c0_i32_0 = arith.constant 0 : i32
    %c0_i32_1 = arith.constant 0 : i32
    return %c0_i32, %c0_i32_0 : i32, i32
  }
  func.func @transform_3(%arg0: i32, %arg1: i32) -> (i32, i32) {
    %c0_i32 = arith.constant 0 : i32
    %c0_i32_0 = arith.constant 0 : i32
    return %arg0, %c0_i32 : i32, i32
  }
}

module attributes {stable_mosaic.version = 11 : i64} {
  func.func @_out_kernel(%arg0: i32, %arg1: i32, %arg2: memref<128x256xbf16, #tpu.memory_space<vmem>>, %arg3: memref<256x32xbf16, #tpu.memory_space<vmem>>, %arg4: memref<1x32xf32, #tpu.memory_space<vmem>>, %arg5: memref<1x1xf32, #tpu.memory_space<vmem>>, %arg6: memref<128x1xf32, #tpu.memory_space<vmem>>, %arg7: memref<128x32xf32, #tpu.memory_space<vmem>>) attributes {dimension_semantics = [#tpu.dimension_semantics<parallel>, #tpu.dimension_semantics<arbitrary>], iteration_bounds = array<i64: 2, 1>, scalar_prefetch = 0 : i64, scratch_operands = 1 : i64, tpu.core_type = #tpu.core_type<tc>, window_params = [{transform_indices = @transform_0, window_bounds = array<i64: 128, 256>}, {pipeline_mode = #tpu.pipeline_mode<synchronous>, transform_indices = @transform_1, window_bounds = array<i64: 256, 32>}, {pipeline_mode = #tpu.pipeline_mode<synchronous>, transform_indices = @transform_2, window_bounds = array<i64: 1, 32>}, {pipeline_mode = #tpu.pipeline_mode<synchronous>, transform_indices = @transform_3, window_bounds = array<i64: 1, 1>}, {transform_indices = @transform_4, window_bounds = array<i64: 128, 1>}]} {
    %c0_i32 = arith.constant 0 : i32
    %0 = arith.cmpi eq, %arg1, %c0_i32 : i32
    %1 = arith.extui %0 : i1 to i32
    %c0_i32_0 = arith.constant 0 : i32
    %2 = arith.cmpi ne, %1, %c0_i32_0 : i32
    scf.if %2 {
      %cst_9 = arith.constant 0.000000e+00 : f32
      %15 = vector.broadcast %cst_9 : f32 to vector<128x32xf32>
      %c0_10 = arith.constant 0 : index
      %c0_11 = arith.constant 0 : index
      %16 = vector.load %arg7[%c0_10, %c0_11] : memref<128x32xf32, #tpu.memory_space<vmem>>, vector<128x32xf32>
      tpu.vector_store %arg7[%c0_10, %c0_11], %15 {strides = array<i32>} : memref<128x32xf32, #tpu.memory_space<vmem>>, vector<128x32xf32>,
    } else {
    }
    %c256_i32 = arith.constant 256 : i32
    %3 = arith.muli %arg1, %c256_i32 : i32
    %4 = tpu.assume_multiple %3, 256 : i32
    %5 = arith.index_cast %4 : i32 to index
    %c0 = arith.constant 0 : index
    %6 = vector.load %arg3[%5, %c0] : memref<256x32xbf16, #tpu.memory_space<vmem>>, vector<256x32xbf16>
    %c0_1 = arith.constant 0 : index
    %c0_2 = arith.constant 0 : index
    %7 = vector.load %arg7[%c0_1, %c0_2] : memref<128x32xf32, #tpu.memory_space<vmem>>, vector<128x32xf32>
    %c0_3 = arith.constant 0 : index
    %c0_4 = arith.constant 0 : index
    %8 = vector.load %arg2[%c0_3, %c0_4] : memref<128x256xbf16, #tpu.memory_space<vmem>>, vector<128x256xbf16>
    %cst = arith.constant dense<0.000000e+00> : vector<128x32xf32>
    %9 = tpu.matmul %8, %6, %cst {dimension_numbers = #tpu.dot_dimension_numbers<[1], [0], [0], [1], [0, 0, 1, 1], [], []>} : vector<128x256xbf16>, vector<256x32xbf16>, vector<128x32xf32> -> vector<128x32xf32>
    %10 = arith.addf %7, %9 : vector<128x32xf32>
    %c0_5 = arith.constant 0 : index
    %c0_6 = arith.constant 0 : index
    %11 = vector.load %arg7[%c0_5, %c0_6] : memref<128x32xf32, #tpu.memory_space<vmem>>, vector<128x32xf32>
    tpu.vector_store %arg7[%c0_5, %c0_6], %10 {strides = array<i32>} : memref<128x32xf32, #tpu.memory_space<vmem>>, vector<128x32xf32>,
    %c0_i32_7 = arith.constant 0 : i32
    %12 = arith.cmpi eq, %arg1, %c0_i32_7 : i32
    %13 = arith.extui %12 : i1 to i32
    %c0_i32_8 = arith.constant 0 : i32
    %14 = arith.cmpi ne, %13, %c0_i32_8 : i32
    scf.if %14 {
      %c0_9 = arith.constant 0 : index
      %c0_10 = arith.constant 0 : index
      %15 = vector.load %arg4[%c0_9, %c0_10] : memref<1x32xf32, #tpu.memory_space<vmem>>, vector<1x32xf32>
      %c0_11 = arith.constant 0 : index
      %c0_12 = arith.constant 0 : index
      %16 = vector.load %arg7[%c0_11, %c0_12] : memref<128x32xf32, #tpu.memory_space<vmem>>, vector<128x32xf32>
      %17 = vector.broadcast %15 : vector<1x32xf32> to vector<128x32xf32>
      %18 = arith.mulf %16, %17 : vector<128x32xf32>
      %cst_13 = arith.constant dense<0.000000e+00> : vector<128xf32>
      %19 = vector.multi_reduction <add>, %18, %cst_13 [1] : vector<128x32xf32> to vector<128xf32>
      %20 = vector.shape_cast %19 : vector<128xf32> to vector<128x1xf32>
      %c0_14 = arith.constant 0 : index
      %c0_15 = arith.constant 0 : index
      %21 = vector.load %arg5[%c0_14, %c0_15] : memref<1x1xf32, #tpu.memory_space<vmem>>, vector<1x1xf32>
      %22 = vector.broadcast %21 : vector<1x1xf32> to vector<128x1xf32>
      %23 = arith.addf %20, %22 : vector<128x1xf32>
      %c0_16 = arith.constant 0 : index
      %c0_17 = arith.constant 0 : index
      %24 = vector.load %arg6[%c0_16, %c0_17] : memref<128x1xf32, #tpu.memory_space<vmem>>, vector<128x1xf32>
      tpu.vector_store %arg6[%c0_16, %c0_17], %23 {strides = array<i32>} : memref<128x1xf32, #tpu.memory_space<vmem>>, vector<128x1xf32>,
    } else {
    }
    return
  }
  func.func @transform_0(%arg0: i32, %arg1: i32) -> (i32, i32) {
    %c0_i32 = arith.constant 0 : i32
    return %arg0, %arg1 : i32, i32
  }
  func.func @transform_1(%arg0: i32, %arg1: i32) -> (i32, i32) {
    %c0_i32 = arith.constant 0 : i32
    %c0_i32_0 = arith.constant 0 : i32
    %c0_i32_1 = arith.constant 0 : i32
    return %c0_i32, %c0_i32_0 : i32, i32
  }
  func.func @transform_2(%arg0: i32, %arg1: i32) -> (i32, i32) {
    %c0_i32 = arith.constant 0 : i32
    %c0_i32_0 = arith.constant 0 : i32
    %c0_i32_1 = arith.constant 0 : i32
    return %c0_i32, %c0_i32_0 : i32, i32
  }
  func.func @transform_3(%arg0: i32, %arg1: i32) -> (i32, i32) {
    %c0_i32 = arith.constant 0 : i32
    %c0_i32_0 = arith.constant 0 : i32
    %c0_i32_1 = arith.constant 0 : i32
    return %c0_i32, %c0_i32_0 : i32, i32
  }
  func.func @transform_4(%arg0: i32, %arg1: i32) -> (i32, i32) {
    %c0_i32 = arith.constant 0 : i32
    %c0_i32_0 = arith.constant 0 : i32
    return %arg0, %c0_i32 : i32, i32
  }
}

</mosaic_0001>

<llo_original>
// kernel: _lambda_.5
$region0: #{_lambda_.5}
  #allocation0 [shape = 'u32[]', space=smem, size = 0x4, offset = 0x4, fixed_abs, tag = 'smem constant byte address 0x4 - core index']
  #allocation1 [shape = 'u32[144,128]{1,0:T(1,128)}', space=vmem, size = 0x12000, scoped, tag = 'internal scratch']
  #allocation2 [shape = 'f32[128,32]{1,0:T(8,128)}', space=vmem, size = 0x10000, scoped, tag = 'scratch operand']
  #allocation3 [shape = 'f32[1,1]{1,0:T(1,128)S(1)}', space=vmem, size = 0x200, scoped, tag = 'scoped memory for _lambda_.5']
  %s0 = inlined_call_operand.vmem [shape: bf16[256,256], index: 0, kind: input, shape index: {}]
  %s1 = inlined_call_operand.vmem [shape: bf16[256,32], index: 1, kind: input, shape index: {}]
  %s2 = inlined_call_operand.vmem [shape: f32[1,32], index: 2, kind: input, shape index: {}]
  %s3 = inlined_call_operand.<no memory space> [shape: f32[1,1], index: 3, kind: input, shape index: {}]
  %s4 = inlined_call_operand.vmem [shape: f32[256,1], index: 4, kind: output, shape index: {}]
  %s5 = sld [smem:[#allocation0]]
  $region57: #{_lambda_.5} parent=0
    _
  %s7 = ssub.s32 1, %s5
  %s8 = scalar_select 0, %s7, %s5
  %v9 = vstv %s3
  %10 = vst [vmem:[#allocation3] sm:$0x1] %v9
  loop: start=0, step=1, limit=4
  $region2: #{_lambda_.5} parent=0 // loop_pre_header
    _
  $region3: #{_lambda_.5} parent=0 // loop_header
    %s12 = sphi 0, %s16
    %p13 = scmp.ge.s32.totalorder %s12, 4
    %s19 = sphi 0, %s31
    %s20 = sphi 0, %s27
    %s21 = sphi 0, %s19
    %s22 = sphi 0, %s20
    %s23 = sphi 0, %s21
    %s24 = sphi 0, %s22
    %s36 = sphi 0, %s38
    %s39 = sphi 0, %s36
    %s40 = sphi 0, %s39
    %s56 = sphi 0, %s40
    %s60 = sphi 0, %s60
    %s62 = sphi 0, %s60
    %s63 = sphi 0, %s62
    %s77 = sphi 0, %s63
    %s81 = sphi 0, %s81
    %s83 = sphi 0, %s81
    %s84 = sphi 0, %s83
    %s98 = sphi 0, %s84
    %s102 = sphi 0, %s102
    %s104 = sphi 0, %s102
    %s105 = sphi 0, %s104
    %s119 = sphi 0, %s105
    %s125 = sphi 0, %s127
    %s128 = sphi 0, %s125
    %s129 = sphi 0, %s128
    %s145 = sphi 0, %s129
  $region4: #{_lambda_.5} parent=0 // loop_header_branch
    %15 = sbr.rel (%p13) target = $region8
  $region5: #{_lambda_.5} parent=0 // loop_body
    %s17 = ssub.s32 %s12, 1
    %s18 = ssub.s32 %s12, 2
    %s25 = sadd.s32 1, %s20
    %p26 = scmp.ge.s32.totalorder %s25, 1
    %s27 = scalar_select %p26, 0, %s25
    %s28 = sadd.s32 1, %s19
    %s29 = scalar_select %p26, %s28, %s19
    %p30 = scmp.ge.s32.totalorder %s29, 2
    %s31 = scalar_select %p30, 0, %s29
    %s32 = ssub.s32 %s19, %s31
    %s33 = ssub.s32 %s20, %s27
    %s34 = sor.u32 %s32, %s33
    %p35 = scmp.eq.s32.totalorder %s34, 0
    %s37 = sadd.s32 %s36, 1
    %s38 = scalar_select %p35, %s36, %s37
    %p41 = pneg %p35
    %p42 = scmp.eq.s32.totalorder %s12, 1
    %p43 = por %p41, %p42
    %p44 = scmp.ne.s32.totalorder %s36, %s39
    %p45 = scmp.eq.s32.totalorder %s12, 0
    %p46 = por %p44, %p45
    %p47 = scmp.ne.s32.totalorder %s36, %s39
    %p48 = scmp.eq.s32.totalorder %s17, 1
    %p49 = por %p47, %p48
    %p50 = scmp.ne.s32.totalorder %s39, %s40
    %p51 = scmp.eq.s32.totalorder %s17, 0
    %p52 = por %p50, %p51
    %p53 = scmp.ne.s32.totalorder %s39, %s40
    %p54 = scmp.eq.s32.totalorder %s18, 1
    %p55 = por %p53, %p54
    %p57 = scmp.ne.s32.totalorder %s40, %s56
    %p58 = scmp.eq.s32.totalorder %s18, 0
    %p59 = por %p57, %p58
    %s61 = sadd.s32 %s60, 1
    %p64 = scmp.eq.s32.totalorder %s12, 1
    %p65 = scmp.ne.s32.totalorder %s60, %s62
    %p66 = scmp.eq.s32.totalorder %s12, 0
    %p67 = por %p65, %p66
    %p68 = scmp.ne.s32.totalorder %s60, %s62
    %p69 = scmp.eq.s32.totalorder %s17, 1
    %p70 = por %p68, %p69
    %p71 = scmp.ne.s32.totalorder %s62, %s63
    %p72 = scmp.eq.s32.totalorder %s17, 0
    %p73 = por %p71, %p72
    %p74 = scmp.ne.s32.totalorder %s62, %s63
    %p75 = scmp.eq.s32.totalorder %s18, 1
    %p76 = por %p74, %p75
    %p78 = scmp.ne.s32.totalorder %s63, %s77
    %p79 = scmp.eq.s32.totalorder %s18, 0
    %p80 = por %p78, %p79
    %s82 = sadd.s32 %s81, 1
    %p85 = scmp.eq.s32.totalorder %s12, 1
    %p86 = scmp.ne.s32.totalorder %s81, %s83
    %p87 = scmp.eq.s32.totalorder %s12, 0
    %p88 = por %p86, %p87
    %p89 = scmp.ne.s32.totalorder %s81, %s83
    %p90 = scmp.eq.s32.totalorder %s17, 1
    %p91 = por %p89, %p90
    %p92 = scmp.ne.s32.totalorder %s83, %s84
    %p93 = scmp.eq.s32.totalorder %s17, 0
    %p94 = por %p92, %p93
    %p95 = scmp.ne.s32.totalorder %s83, %s84
    %p96 = scmp.eq.s32.totalorder %s18, 1
    %p97 = por %p95, %p96
    %p99 = scmp.ne.s32.totalorder %s84, %s98
    %p100 = scmp.eq.s32.totalorder %s18, 0
    %p101 = por %p99, %p100
    %s103 = sadd.s32 %s102, 1
    %p106 = scmp.eq.s32.totalorder %s12, 1
    %p107 = scmp.ne.s32.totalorder %s102, %s104
    %p108 = scmp.eq.s32.totalorder %s12, 0
    %p109 = por %p107, %p108
    %p110 = scmp.ne.s32.totalorder %s102, %s104
    %p111 = scmp.eq.s32.totalorder %s17, 1
    %p112 = por %p110, %p111
    %p113 = scmp.ne.s32.totalorder %s104, %s105
    %p114 = scmp.eq.s32.totalorder %s17, 0
    %p115 = por %p113, %p114
    %p116 = scmp.ne.s32.totalorder %s104, %s105
    %p117 = scmp.eq.s32.totalorder %s18, 1
    %p118 = por %p116, %p117
    %p120 = scmp.ne.s32.totalorder %s105, %s119
    %p121 = scmp.eq.s32.totalorder %s18, 0
    %p122 = por %p120, %p121
    %s123 = ssub.s32 %s19, %s31
    %p124 = scmp.eq.s32.totalorder %s123, 0
    %s126 = sadd.s32 %s125, 1
    %s127 = scalar_select %p124, %s125, %s126
    %p130 = pneg %p124
    %p131 = scmp.eq.s32.totalorder %s12, 1
    %p132 = por %p130, %p131
    %p133 = scmp.ne.s32.totalorder %s125, %s128
    %p134 = scmp.eq.s32.totalorder %s12, 0
    %p135 = por %p133, %p134
    %p136 = scmp.ne.s32.totalorder %s125, %s128
    %p137 = scmp.eq.s32.totalorder %s17, 1
    %p138 = por %p136, %p137
    %p139 = scmp.ne.s32.totalorder %s128, %s129
    %p140 = scmp.eq.s32.totalorder %s17, 0
    %p141 = por %p139, %p140
    %p142 = scmp.ne.s32.totalorder %s128, %s129
    %p143 = scmp.eq.s32.totalorder %s18, 1
    %p144 = por %p142, %p143
    %p146 = scmp.ne.s32.totalorder %s129, %s145
    %p147 = scmp.eq.s32.totalorder %s18, 0
    %p148 = por %p146, %p147
    %p149 = scmp.le.s32.totalorder 1, %s12
    %p150 = scmp.lt.s32.totalorder %s12, 3
    %p151 = pnand %p149, %p150
    %p152 = pneg %p151
    // Predicated region
    $region9: #{_lambda_.5} parent=5 // pred_check
      _
    $region10: #{_lambda_.5} parent=5 // pred_check_branch
      %154 = sbr.rel (%p151) target = $region12
    $region11: #{_lambda_.5} parent=5 // pred_region
      %s155 = ssub.s32 %s12, 1
      // Predicated region
      $region13: #{_lambda_.5} parent=11 // pred_check
        %p156 = pneg %p73
      $region14: #{_lambda_.5} parent=11 // pred_check_branch
        %158 = sbr.rel (%p156) target = $region16
      $region15: #{_lambda_.5} parent=11 // pred_region
        _
      $region16: #{_lambda_.5} parent=11 // pred_fallthru
        _
      // Predicated region
      $region17: #{_lambda_.5} parent=11 // pred_check
        %p159 = pneg %p94
      $region18: #{_lambda_.5} parent=11 // pred_check_branch
        %161 = sbr.rel (%p159) target = $region20
      $region19: #{_lambda_.5} parent=11 // pred_region
        _
      $region20: #{_lambda_.5} parent=11 // pred_fallthru
        _
      // Predicated region
      $region21: #{_lambda_.5} parent=11 // pred_check
        %p162 = pneg %p115
      $region22: #{_lambda_.5} parent=11 // pred_check_branch
        %164 = sbr.rel (%p162) target = $region24
      $region23: #{_lambda_.5} parent=11 // pred_region
        _
      $region24: #{_lambda_.5} parent=11 // pred_fallthru
        _
    $region12: #{_lambda_.5} parent=5 // pred_fallthru
      _
    %p165 = scmp.lt.s32.totalorder %s12, 2
    // Predicated region
    $region25: #{_lambda_.5} parent=5 // pred_check
      %p166 = pneg %p165
    $region26: #{_lambda_.5} parent=5 // pred_check_branch
      %168 = sbr.rel (%p166) target = $region28
    $region27: #{_lambda_.5} parent=5 // pred_region
      // Predicated region
      $region29: #{_lambda_.5} parent=27 // pred_check
        %p169 = pneg %p46
      $region30: #{_lambda_.5} parent=27 // pred_check_branch
        %171 = sbr.rel (%p169) target = $region32
      $region31: #{_lambda_.5} parent=27 // pred_region
        %s172 = smul.u32 16, %s19
        %s173 = smul.u32 2, %s20
        %p174 = scmp.lt.s32.totalorder %s172, 31
        %s175 = scalar_select %p174, %s172, 31
        %p176 = scmp.lt.s32.totalorder %s173, 1
        %s177 = scalar_select %p176, %s173, 1
        %s178 = smul.addr %s175, 2
        %s179 = sadd.s32 %s177, %s178
        %s180 = smul.addr %s179, 4
        %s181 = scalar_lea.vmem %s0, %s180
        %s182 = smul.u32 16, %s19
        %s183 = smul.u32 2, %s20
      $region32: #{_lambda_.5} parent=27 // pred_fallthru
        _
    $region28: #{_lambda_.5} parent=5 // pred_fallthru
      _
    %p184 = scmp.le.s32.totalorder 1, %s12
    %p185 = scmp.lt.s32.totalorder %s12, 3
    %p186 = pnand %p184, %p185
    %p187 = pneg %p186
    // Predicated region
    $region33: #{_lambda_.5} parent=5 // pred_check
      _
    $region34: #{_lambda_.5} parent=5 // pred_check_branch
      %189 = sbr.rel (%p186) target = $region36
    $region35: #{_lambda_.5} parent=5 // pred_region
      %s190 = ssub.s32 %s12, 1
      %s191 = smul.u32 16, %s21
      %s192 = smul.u32 2, %s22
      %p193 = scmp.lt.s32.totalorder %s191, 31
      %s194 = scalar_select %p193, %s191, 31
      %p195 = scmp.lt.s32.totalorder %s192, 1
      %s196 = scalar_select %p195, %s192, 1
      %s197 = smul.addr %s194, 2
      %s198 = sadd.s32 %s196, %s197
      %s199 = smul.addr %s198, 4
      %s200 = scalar_lea.vmem %s0, %s199
      %p201 = pneg %p52
      %p202 = pneg %p49
      %p203 = pneg %p73
      %p204 = pneg %p70
      %p205 = pneg %p94
      %p206 = pneg %p91
      %p207 = pneg %p115
      %p208 = pneg %p112
      %p209 = pneg %p141
      %p210 = pneg %p138
      %s211 = smul.u32 16, %s21
      %p212 = scmp.lt.s32.totalorder %s211, 31
      %s213 = scalar_select %p212, %s211, 31
      %s214 = smul.addr %s213, 8
      %s215 = scalar_lea.vmem %s4, %s214
      %s216 = smul.u32 16, %s21
      %s217 = smul.u32 2, %s22
      %p218 = scmp.lt.s32.totalorder %s216, 31
      %s219 = scalar_select %p218, %s216, 31
      %p220 = scmp.lt.s32.totalorder %s217, 1
      %s221 = scalar_select %p220, %s217, 1
      %s222 = smul.addr %s219, 2
      %s223 = sadd.s32 %s221, %s222
      %s224 = smul.addr %s223, 4
      %s225 = scalar_lea.vmem %s0, %s224
      %s226 = smul.u32 16, %s21
      %s227 = smul.u32 2, %s22
      %s228 = smul.u32 16, %s21
      %p229 = scmp.lt.s32.totalorder %s228, 31
      %s230 = scalar_select %p229, %s228, 31
      %s231 = smul.addr %s230, 8
      %s232 = scalar_lea.vmem %s4, %s231
      %s233 = smul.u32 16, %s21
      %p235 = scmp.eq.s32.totalorder %s22, 0
      // Predicated region
      $region37: #{_lambda_.5} parent=35 // pred_check
        %p236 = pneg %p235
      $region38: #{_lambda_.5} parent=35 // pred_check_branch
        %238 = sbr.rel (%p236) target = $region40
      $region39: #{_lambda_.5} parent=35 // pred_region
        %vm239 = vcmask 261120
        %240 = vst.msk [vmem:[#allocation2] sm:$0xff] %vm239, 0.0
        %241 = vst.msk [vmem:[#allocation2 + $0x8] sm:$0xff] %vm239, 0.0
        %242 = vst.msk [vmem:[#allocation2 + $0x10] sm:$0xff] %vm239, 0.0
        %243 = vst.msk [vmem:[#allocation2 + $0x18] sm:$0xff] %vm239, 0.0
        %244 = vst.msk [vmem:[#allocation2 + $0x20] sm:$0xff] %vm239, 0.0
        %245 = vst.msk [vmem:[#allocation2 + $0x28] sm:$0xff] %vm239, 0.0
        %246 = vst.msk [vmem:[#allocation2 + $0x30] sm:$0xff] %vm239, 0.0
        %247 = vst.msk [vmem:[#allocation2 + $0x38] sm:$0xff] %vm239, 0.0
        %248 = vst.msk [vmem:[#allocation2 + $0x40] sm:$0xff] %vm239, 0.0
        %249 = vst.msk [vmem:[#allocation2 + $0x48] sm:$0xff] %vm239, 0.0
        %250 = vst.msk [vmem:[#allocation2 + $0x50] sm:$0xff] %vm239, 0.0
        %251 = vst.msk [vmem:[#allocation2 + $0x58] sm:$0xff] %vm239, 0.0
        %252 = vst.msk [vmem:[#allocation2 + $0x60] sm:$0xff] %vm239, 0.0
        %253 = vst.msk [vmem:[#allocation2 + $0x68] sm:$0xff] %vm239, 0.0
        %254 = vst.msk [vmem:[#allocation2 + $0x70] sm:$0xff] %vm239, 0.0
        %255 = vst.msk [vmem:[#allocation2 + $0x78] sm:$0xff] %vm239, 0.0
      $region40: #{_lambda_.5} parent=35 // pred_fallthru
        _
      %s256 = smul.u32 %s22, 256
      %s257 = sshra.s32 %s256, 3
      %s258 = sand.u32 %s256, 7
      %s259 = smul.addr %s257, 4
      %s260 = scalar_lea.vmem %s1, %s259
      %v261 = vld [vmem:[%s260] sm:$0xf]
      %v262 = vld [vmem:[%s260 + $0x4] sm:$0xf]
      %v263 = vld [vmem:[%s260 + $0x8] sm:$0xf]
      %v264 = vld [vmem:[%s260 + $0xc] sm:$0xf]
      %v265 = vld [vmem:[%s260 + $0x10] sm:$0xf]
      %v266 = vld [vmem:[%s260 + $0x14] sm:$0xf]
      %v267 = vld [vmem:[%s260 + $0x18] sm:$0xf]
      %v268 = vld [vmem:[%s260 + $0x1c] sm:$0xf]
      %v269 = vld [vmem:[%s260 + $0x20] sm:$0xf]
      %v270 = vld [vmem:[%s260 + $0x24] sm:$0xf]
      %v271 = vld [vmem:[%s260 + $0x28] sm:$0xf]
      %v272 = vld [vmem:[%s260 + $0x2c] sm:$0xf]
      %v273 = vld [vmem:[%s260 + $0x30] sm:$0xf]
      %v274 = vld [vmem:[%s260 + $0x34] sm:$0xf]
      %v275 = vld [vmem:[%s260 + $0x38] sm:$0xf]
      %v276 = vld [vmem:[%s260 + $0x3c] sm:$0xf]
      %v277 = vld [vmem:[%s260 + $0x40] sm:$0xf]
      %v278 = vld [vmem:[%s260 + $0x44] sm:$0xf]
      %v279 = vld [vmem:[%s260 + $0x48] sm:$0xf]
      %v280 = vld [vmem:[%s260 + $0x4c] sm:$0xf]
      %v281 = vld [vmem:[%s260 + $0x50] sm:$0xf]
      %v282 = vld [vmem:[%s260 + $0x54] sm:$0xf]
      %v283 = vld [vmem:[%s260 + $0x58] sm:$0xf]
      %v284 = vld [vmem:[%s260 + $0x5c] sm:$0xf]
      %v285 = vld [vmem:[%s260 + $0x60] sm:$0xf]
      %v286 = vld [vmem:[%s260 + $0x64] sm:$0xf]
      %v287 = vld [vmem:[%s260 + $0x68] sm:$0xf]
      %v288 = vld [vmem:[%s260 + $0x6c] sm:$0xf]
      %v289 = vld [vmem:[%s260 + $0x70] sm:$0xf]
      %v290 = vld [vmem:[%s260 + $0x74] sm:$0xf]
      %v291 = vld [vmem:[%s260 + $0x78] sm:$0xf]
      %v292 = vld [vmem:[%s260 + $0x7c] sm:$0xf]
      %v293 = vld [vmem:[#allocation2] sm:$0xff]
      %v294 = vld [vmem:[#allocation2 + $0x8] sm:$0xff]
      %v295 = vld [vmem:[#allocation2 + $0x10] sm:$0xff]
      %v296 = vld [vmem:[#allocation2 + $0x18] sm:$0xff]
      %v297 = vld [vmem:[#allocation2 + $0x20] sm:$0xff]
      %v298 = vld [vmem:[#allocation2 + $0x28] sm:$0xff]
      %v299 = vld [vmem:[#allocation2 + $0x30] sm:$0xff]
      %v300 = vld [vmem:[#allocation2 + $0x38] sm:$0xff]
      %v301 = vld [vmem:[#allocation2 + $0x40] sm:$0xff]
      %v302 = vld [vmem:[#allocation2 + $0x48] sm:$0xff]
      %v303 = vld [vmem:[#allocation2 + $0x50] sm:$0xff]
      %v304 = vld [vmem:[#allocation2 + $0x58] sm:$0xff]
      %v305 = vld [vmem:[#allocation2 + $0x60] sm:$0xff]
      %v306 = vld [vmem:[#allocation2 + $0x68] sm:$0xff]
      %v307 = vld [vmem:[#allocation2 + $0x70] sm:$0xff]
      %v308 = vld [vmem:[#allocation2 + $0x78] sm:$0xff]
      %v309 = vld [vmem:[%s225] sm:$0xff]
      %v310 = vld [vmem:[%s225 + $0x8] sm:$0xff]
      %v311 = vld [vmem:[%s225 + $0x10] sm:$0xff]
      %v312 = vld [vmem:[%s225 + $0x18] sm:$0xff]
      %v313 = vld [vmem:[%s225 + $0x20] sm:$0xff]
      %v314 = vld [vmem:[%s225 + $0x28] sm:$0xff]
      %v315 = vld [vmem:[%s225 + $0x30] sm:$0xff]
      %v316 = vld [vmem:[%s225 + $0x38] sm:$0xff]
      %v317 = vld [vmem:[%s225 + $0x40] sm:$0xff]
      %v318 = vld [vmem:[%s225 + $0x48] sm:$0xff]
      %v319 = vld [vmem:[%s225 + $0x50] sm:$0xff]
      %v320 = vld [vmem:[%s225 + $0x58] sm:$0xff]
      %v321 = vld [vmem:[%s225 + $0x60] sm:$0xff]
      %v322 = vld [vmem:[%s225 + $0x68] sm:$0xff]
      %v323 = vld [vmem:[%s225 + $0x70] sm:$0xff]
      %v324 = vld [vmem:[%s225 + $0x78] sm:$0xff]
      %v341 = vunpack.c.l.b16 %v309
      %v342 = vunpack.c.h.b16 %v309
      %v343 = vunpack.c.l.b16 %v310
      %v344 = vunpack.c.h.b16 %v310
      %v345 = vunpack.c.l.b16 %v311
      %v346 = vunpack.c.h.b16 %v311
      %v347 = vunpack.c.l.b16 %v312
      %v348 = vunpack.c.h.b16 %v312
      %v349 = vunpack.c.l.b16 %v313
      %v350 = vunpack.c.h.b16 %v313
      %v351 = vunpack.c.l.b16 %v314
      %v352 = vunpack.c.h.b16 %v314
      %v353 = vunpack.c.l.b16 %v315
      %v354 = vunpack.c.h.b16 %v315
      %v355 = vunpack.c.l.b16 %v316
      %v356 = vunpack.c.h.b16 %v316
      %v357 = vunpack.c.l.b16 %v317
      %v358 = vunpack.c.h.b16 %v317
      %v359 = vunpack.c.l.b16 %v318
      %v360 = vunpack.c.h.b16 %v318
      %v361 = vunpack.c.l.b16 %v319
      %v362 = vunpack.c.h.b16 %v319
      %v363 = vunpack.c.l.b16 %v320
      %v364 = vunpack.c.h.b16 %v320
      %v365 = vunpack.c.l.b16 %v321
      %v366 = vunpack.c.h.b16 %v321
      %v367 = vunpack.c.l.b16 %v322
      %v368 = vunpack.c.h.b16 %v322
      %v369 = vunpack.c.l.b16 %v323
      %v370 = vunpack.c.h.b16 %v323
      %v371 = vunpack.c.l.b16 %v324
      %v372 = vunpack.c.h.b16 %v324
      %v373 = vpack.c.b16 %v343, %v341
      %v374 = vpack.c.b16 %v344, %v342
      %v375 = vpack.c.b16 %v347, %v345
      %v376 = vpack.c.b16 %v348, %v346
      %v377 = vpack.c.b16 %v351, %v349
      %v378 = vpack.c.b16 %v352, %v350
      %v379 = vpack.c.b16 %v355, %v353
      %v380 = vpack.c.b16 %v356, %v354
      %v381 = vpack.c.b16 %v359, %v357
      %v382 = vpack.c.b16 %v360, %v358
      %v383 = vpack.c.b16 %v363, %v361
      %v384 = vpack.c.b16 %v364, %v362
      %v385 = vpack.c.b16 %v367, %v365
      %v386 = vpack.c.b16 %v368, %v366
      %v387 = vpack.c.b16 %v371, %v369
      %v388 = vpack.c.b16 %v372, %v370
      %v437 = vunpack.c.l.b16 %v261
      %v438 = vunpack.c.l.b16 %v262
      %v439 = vunpack.c.l.b16 %v263
      %v440 = vunpack.c.l.b16 %v264
      %v441 = vunpack.c.l.b16 %v265
      %v442 = vunpack.c.l.b16 %v266
      %v443 = vunpack.c.l.b16 %v267
      %v444 = vunpack.c.l.b16 %v268
      %v445 = vunpack.c.l.b16 %v269
      %v446 = vunpack.c.l.b16 %v270
      %v447 = vunpack.c.l.b16 %v271
      %v448 = vunpack.c.l.b16 %v272
      %v449 = vunpack.c.l.b16 %v273
      %v450 = vunpack.c.l.b16 %v274
      %v451 = vunpack.c.l.b16 %v275
      %v452 = vunpack.c.l.b16 %v276
      %v453 = vunpack.c.l.b16 %v277
      %v454 = vunpack.c.l.b16 %v278
      %v455 = vunpack.c.l.b16 %v279
      %v456 = vunpack.c.l.b16 %v280
      %v457 = vunpack.c.l.b16 %v281
      %v458 = vunpack.c.l.b16 %v282
      %v459 = vunpack.c.l.b16 %v283
      %v460 = vunpack.c.l.b16 %v284
      %v461 = vunpack.c.l.b16 %v285
      %v462 = vunpack.c.l.b16 %v286
      %v463 = vunpack.c.l.b16 %v287
      %v464 = vunpack.c.l.b16 %v288
      %v465 = vunpack.c.l.b16 %v289
      %v466 = vunpack.c.l.b16 %v290
      %v467 = vunpack.c.l.b16 %v291
      %v468 = vunpack.c.l.b16 %v292
      %v469 = vpack.c.b16 %v438, %v437
      %v470 = vpack.c.b16 %v440, %v439
      %v471 = vpack.c.b16 %v442, %v441
      %v472 = vpack.c.b16 %v444, %v443
      %v473 = vpack.c.b16 %v446, %v445
      %v474 = vpack.c.b16 %v448, %v447
      %v475 = vpack.c.b16 %v450, %v449
      %v476 = vpack.c.b16 %v452, %v451
      %v477 = vpack.c.b16 %v454, %v453
      %v478 = vpack.c.b16 %v456, %v455
      %v479 = vpack.c.b16 %v458, %v457
      %v480 = vpack.c.b16 %v460, %v459
      %v481 = vpack.c.b16 %v462, %v461
      %v482 = vpack.c.b16 %v464, %v463
      %v483 = vpack.c.b16 %v466, %v465
      %v484 = vpack.c.b16 %v468, %v467
      %501 = vmatprep.subr.bf16.mxu0 0
      %502 = vmatpush1.bf16.msra.mxu0 %v476
      %503 = vmatprep.subr.bf16.mxu0 0
      %504 = vmatpush1.bf16.msra.mxu0 %v475
      %505 = vmatprep.subr.bf16.mxu0 0
      %506 = vmatpush1.bf16.msra.mxu0 %v474
      %507 = vmatprep.subr.bf16.mxu0 0
      %508 = vmatpush1.bf16.msra.mxu0 %v473
      %509 = vmatprep.subr.bf16.mxu0 0
      %510 = vmatpush1.bf16.msra.mxu0 %v472
      %511 = vmatprep.subr.bf16.mxu0 0
      %512 = vmatpush1.bf16.msra.mxu0 %v471
      %513 = vmatprep.subr.bf16.mxu0 0
      %514 = vmatpush1.bf16.msra.mxu0 %v470
      %515 = vmatprep.subr.bf16.mxu0 0
      %516 = vmatpush1.bf16.msra.mxu0 %v469
      %517 = vmatprep.subr.bf16.mxu0 0
      %518 = vmatpush2.bf16.msra.mxu0 %v484
      %519 = vmatprep.subr.bf16.mxu0 0
      %520 = vmatpush2.bf16.msra.mxu0 %v483
      %521 = vmatprep.subr.bf16.mxu0 0
      %522 = vmatpush2.bf16.msra.mxu0 %v482
      %523 = vmatprep.subr.bf16.mxu0 0
      %524 = vmatpush2.bf16.msra.mxu0 %v481
      %525 = vmatprep.subr.bf16.mxu0 0
      %526 = vmatpush2.bf16.msra.mxu0 %v480
      %527 = vmatprep.subr.bf16.mxu0 0
      %528 = vmatpush2.bf16.msra.mxu0 %v479
      %529 = vmatprep.subr.bf16.mxu0 0
      %530 = vmatpush2.bf16.msra.mxu0 %v478
      %531 = vmatprep.subr.bf16.mxu0 0
      %532 = vmatpush2.bf16.msra.mxu0 %v477
      %533 = vmatprep.mubr.bf16.mxu0 %v374
      %534 = vmatmul.mubr.bf16.gmra.mxu0 %v373
      %v535 = vpop.f32.mrf.mxu0
      %v536 = vadd.f32 0.0, %v535
      %v537 = vpop.f32.mrf.mxu0
      %v538 = vpop.f32.mrf.mxu0
      %v539 = vadd.f32 0.0, %v538
      %v540 = vpop.f32.mrf.mxu0
      %541 = vmatprep.mubr.bf16.mxu0 %v376
      %542 = vmatmul.mubr.bf16.gmra.mxu0 %v375
      %v543 = vpop.f32.mrf.mxu0
      %v544 = vadd.f32 0.0, %v543
      %v545 = vpop.f32.mrf.mxu0
      %v546 = vpop.f32.mrf.mxu0
      %v547 = vadd.f32 0.0, %v546
      %v548 = vpop.f32.mrf.mxu0
      %549 = vmatprep.mubr.bf16.mxu0 %v378
      %550 = vmatmul.mubr.bf16.gmra.mxu0 %v377
      %v551 = vpop.f32.mrf.mxu0
      %v552 = vadd.f32 0.0, %v551
      %v553 = vpop.f32.mrf.mxu0
      %v554 = vpop.f32.mrf.mxu0
      %v555 = vadd.f32 0.0, %v554
      %v556 = vpop.f32.mrf.mxu0
      %557 = vmatprep.mubr.bf16.mxu0 %v380
      %558 = vmatmul.mubr.bf16.gmra.mxu0 %v379
      %v559 = vpop.f32.mrf.mxu0
      %v560 = vadd.f32 0.0, %v559
      %v561 = vpop.f32.mrf.mxu0
      %v562 = vpop.f32.mrf.mxu0
      %v563 = vadd.f32 0.0, %v562
      %v564 = vpop.f32.mrf.mxu0
      %565 = vmatprep.mubr.bf16.mxu0 %v382
      %566 = vmatmul.mubr.bf16.gmra.mxu0 %v381
      %v567 = vpop.f32.mrf.mxu0
      %v568 = vadd.f32 0.0, %v567
      %v569 = vpop.f32.mrf.mxu0
      %v570 = vpop.f32.mrf.mxu0
      %v571 = vadd.f32 0.0, %v570
      %v572 = vpop.f32.mrf.mxu0
      %573 = vmatprep.mubr.bf16.mxu0 %v384
      %574 = vmatmul.mubr.bf16.gmra.mxu0 %v383
      %v575 = vpop.f32.mrf.mxu0
      %v576 = vadd.f32 0.0, %v575
      %v577 = vpop.f32.mrf.mxu0
      %v578 = vpop.f32.mrf.mxu0
      %v579 = vadd.f32 0.0, %v578
      %v580 = vpop.f32.mrf.mxu0
      %581 = vmatprep.mubr.bf16.mxu0 %v386
      %582 = vmatmul.mubr.bf16.gmra.mxu0 %v385
      %v583 = vpop.f32.mrf.mxu0
      %v584 = vadd.f32 0.0, %v583
      %v585 = vpop.f32.mrf.mxu0
      %v586 = vpop.f32.mrf.mxu0
      %v587 = vadd.f32 0.0, %v586
      %v588 = vpop.f32.mrf.mxu0
      %589 = vmatprep.mubr.bf16.mxu0 %v388
      %590 = vmatmul.mubr.bf16.gmra.mxu0 %v387
      %v591 = vpop.f32.mrf.mxu0
      %v592 = vadd.f32 0.0, %v591
      %v593 = vpop.f32.mrf.mxu0
      %v594 = vpop.f32.mrf.mxu0
      %v595 = vadd.f32 0.0, %v594
      %v596 = vpop.f32.mrf.mxu0
      %597 = vdwg.mxu0
      %v598 = vadd.f32 %v293, %v536
      %v599 = vadd.f32 %v294, %v539
      %v600 = vadd.f32 %v295, %v544
      %v601 = vadd.f32 %v296, %v547
      %v602 = vadd.f32 %v297, %v552
      %v603 = vadd.f32 %v298, %v555
      %v604 = vadd.f32 %v299, %v560
      %v605 = vadd.f32 %v300, %v563
      %v606 = vadd.f32 %v301, %v568
      %v607 = vadd.f32 %v302, %v571
      %v608 = vadd.f32 %v303, %v576
      %v609 = vadd.f32 %v304, %v579
      %v610 = vadd.f32 %v305, %v584
      %v611 = vadd.f32 %v306, %v587
      %v612 = vadd.f32 %v307, %v592
      %v613 = vadd.f32 %v308, %v595
      %vm614 = vcmask 261120
      %615 = vst.msk [vmem:[#allocation2] sm:$0xff] %vm614, %v598
      %616 = vst.msk [vmem:[#allocation2 + $0x8] sm:$0xff] %vm614, %v599
      %617 = vst.msk [vmem:[#allocation2 + $0x10] sm:$0xff] %vm614, %v600
      %618 = vst.msk [vmem:[#allocation2 + $0x18] sm:$0xff] %vm614, %v601
      %619 = vst.msk [vmem:[#allocation2 + $0x20] sm:$0xff] %vm614, %v602
      %620 = vst.msk [vmem:[#allocation2 + $0x28] sm:$0xff] %vm614, %v603
      %621 = vst.msk [vmem:[#allocation2 + $0x30] sm:$0xff] %vm614, %v604
      %622 = vst.msk [vmem:[#allocation2 + $0x38] sm:$0xff] %vm614, %v605
      %623 = vst.msk [vmem:[#allocation2 + $0x40] sm:$0xff] %vm614, %v606
      %624 = vst.msk [vmem:[#allocation2 + $0x48] sm:$0xff] %vm614, %v607
      %625 = vst.msk [vmem:[#allocation2 + $0x50] sm:$0xff] %vm614, %v608
      %626 = vst.msk [vmem:[#allocation2 + $0x58] sm:$0xff] %vm614, %v609
      %627 = vst.msk [vmem:[#allocation2 + $0x60] sm:$0xff] %vm614, %v610
      %628 = vst.msk [vmem:[#allocation2 + $0x68] sm:$0xff] %vm614, %v611
      %629 = vst.msk [vmem:[#allocation2 + $0x70] sm:$0xff] %vm614, %v612
      %630 = vst.msk [vmem:[#allocation2 + $0x78] sm:$0xff] %vm614, %v613
      // Predicated region
      $region41: #{_lambda_.5} parent=35 // pred_check
        %p631 = pneg %p235
      $region42: #{_lambda_.5} parent=35 // pred_check_branch
        %633 = sbr.rel (%p631) target = $region44
      $region43: #{_lambda_.5} parent=35 // pred_region
        %v634 = vld [vmem:[%s2] sm:$0x1]
        %v635 = vld [vmem:[#allocation2] sm:$0xff]
        %v636 = vld [vmem:[#allocation2 + $0x8] sm:$0xff]
        %v637 = vld [vmem:[#allocation2 + $0x10] sm:$0xff]
        %v638 = vld [vmem:[#allocation2 + $0x18] sm:$0xff]
        %v639 = vld [vmem:[#allocation2 + $0x20] sm:$0xff]
        %v640 = vld [vmem:[#allocation2 + $0x28] sm:$0xff]
        %v641 = vld [vmem:[#allocation2 + $0x30] sm:$0xff]
        %v642 = vld [vmem:[#allocation2 + $0x38] sm:$0xff]
        %v643 = vld [vmem:[#allocation2 + $0x40] sm:$0xff]
        %v644 = vld [vmem:[#allocation2 + $0x48] sm:$0xff]
        %v645 = vld [vmem:[#allocation2 + $0x50] sm:$0xff]
        %v646 = vld [vmem:[#allocation2 + $0x58] sm:$0xff]
        %v647 = vld [vmem:[#allocation2 + $0x60] sm:$0xff]
        %v648 = vld [vmem:[#allocation2 + $0x68] sm:$0xff]
        %v649 = vld [vmem:[#allocation2 + $0x70] sm:$0xff]
        %v650 = vld [vmem:[#allocation2 + $0x78] sm:$0xff]
        %v652 = vlaneseq
        %v653 = vshrl.u32 %v652, 7
        %v654 = vsub.s32 0, %v653
        %v655 = vrot.slane %v634, %v654
        %v657 = vmul.f32 %v635, %v655
        %v658 = vmul.f32 %v636, %v655
        %v659 = vmul.f32 %v637, %v655
        %v660 = vmul.f32 %v638, %v655
        %v661 = vmul.f32 %v639, %v655
        %v662 = vmul.f32 %v640, %v655
        %v663 = vmul.f32 %v641, %v655
        %v664 = vmul.f32 %v642, %v655
        %v665 = vmul.f32 %v643, %v655
        %v666 = vmul.f32 %v644, %v655
        %v667 = vmul.f32 %v645, %v655
        %v668 = vmul.f32 %v646, %v655
        %v669 = vmul.f32 %v647, %v655
        %v670 = vmul.f32 %v648, %v655
        %v671 = vmul.f32 %v649, %v655
        %v672 = vmul.f32 %v650, %v655
        %v673 = vsel %vm614, %v657, 0.0
        %674 = vadd.xlane.f32.xlu0 %v673
        %v675 = vpop.xlane.xlu0 %674
        %v676 = vsel %vm614, %v658, 0.0
        %677 = vadd.xlane.f32.xlu0 %v676
        %v678 = vpop.xlane.xlu0 %677
        %v679 = vsel %vm614, %v659, 0.0
        %680 = vadd.xlane.f32.xlu0 %v679
        %v681 = vpop.xlane.xlu0 %680
        %v682 = vsel %vm614, %v660, 0.0
        %683 = vadd.xlane.f32.xlu0 %v682
        %v684 = vpop.xlane.xlu0 %683
        %v685 = vsel %vm614, %v661, 0.0
        %686 = vadd.xlane.f32.xlu0 %v685
        %v687 = vpop.xlane.xlu0 %686
        %v688 = vsel %vm614, %v662, 0.0
        %689 = vadd.xlane.f32.xlu0 %v688
        %v690 = vpop.xlane.xlu0 %689
        %v691 = vsel %vm614, %v663, 0.0
        %692 = vadd.xlane.f32.xlu0 %v691
        %v693 = vpop.xlane.xlu0 %692
        %v694 = vsel %vm614, %v664, 0.0
        %695 = vadd.xlane.f32.xlu0 %v694
        %v696 = vpop.xlane.xlu0 %695
        %v697 = vsel %vm614, %v665, 0.0
        %698 = vadd.xlane.f32.xlu0 %v697
        %v699 = vpop.xlane.xlu0 %698
        %v700 = vsel %vm614, %v666, 0.0
        %701 = vadd.xlane.f32.xlu0 %v700
        %v702 = vpop.xlane.xlu0 %701
        %v703 = vsel %vm614, %v667, 0.0
        %704 = vadd.xlane.f32.xlu0 %v703
        %v705 = vpop.xlane.xlu0 %704
        %v706 = vsel %vm614, %v668, 0.0
        %707 = vadd.xlane.f32.xlu0 %v706
        %v708 = vpop.xlane.xlu0 %707
        %v709 = vsel %vm614, %v669, 0.0
        %710 = vadd.xlane.f32.xlu0 %v709
        %v711 = vpop.xlane.xlu0 %710
        %v712 = vsel %vm614, %v670, 0.0
        %713 = vadd.xlane.f32.xlu0 %v712
        %v714 = vpop.xlane.xlu0 %713
        %v715 = vsel %vm614, %v671, 0.0
        %716 = vadd.xlane.f32.xlu0 %v715
        %v717 = vpop.xlane.xlu0 %716
        %v718 = vsel %vm614, %v672, 0.0
        %719 = vadd.xlane.f32.xlu0 %v718
        %v720 = vpop.xlane.xlu0 %719
        %v721 = vld [vmem:[#allocation3] sm:$0x1]
        %v723 = vlaneseq
        %v724 = vshrl.u32 %v723, 7
        %v725 = vsub.s32 0, %v724
        %v726 = vrot.slane %v721, %v725
        %v728 = vadd.f32 %v675, %v726
        %v729 = vadd.f32 %v678, %v726
        %v730 = vadd.f32 %v681, %v726
        %v731 = vadd.f32 %v684, %v726
        %v732 = vadd.f32 %v687, %v726
        %v733 = vadd.f32 %v690, %v726
        %v734 = vadd.f32 %v693, %v726
        %v735 = vadd.f32 %v696, %v726
        %v736 = vadd.f32 %v699, %v726
        %v737 = vadd.f32 %v702, %v726
        %v738 = vadd.f32 %v705, %v726
        %v739 = vadd.f32 %v708, %v726
        %v740 = vadd.f32 %v711, %v726
        %v741 = vadd.f32 %v714, %v726
        %v742 = vadd.f32 %v717, %v726
        %v743 = vadd.f32 %v720, %v726
        %vm744 = vcmask 7168
        %745 = vst.msk [vmem:[%s232] sm:$0xff] %vm744, %v728
        %746 = vst.msk [vmem:[%s232 + $0x8] sm:$0xff] %vm744, %v729
        %747 = vst.msk [vmem:[%s232 + $0x10] sm:$0xff] %vm744, %v730
        %748 = vst.msk [vmem:[%s232 + $0x18] sm:$0xff] %vm744, %v731
        %749 = vst.msk [vmem:[%s232 + $0x20] sm:$0xff] %vm744, %v732
        %750 = vst.msk [vmem:[%s232 + $0x28] sm:$0xff] %vm744, %v733
        %751 = vst.msk [vmem:[%s232 + $0x30] sm:$0xff] %vm744, %v734
        %752 = vst.msk [vmem:[%s232 + $0x38] sm:$0xff] %vm744, %v735
        %753 = vst.msk [vmem:[%s232 + $0x40] sm:$0xff] %vm744, %v736
        %754 = vst.msk [vmem:[%s232 + $0x48] sm:$0xff] %vm744, %v737
        %755 = vst.msk [vmem:[%s232 + $0x50] sm:$0xff] %vm744, %v738
        %756 = vst.msk [vmem:[%s232 + $0x58] sm:$0xff] %vm744, %v739
        %757 = vst.msk [vmem:[%s232 + $0x60] sm:$0xff] %vm744, %v740
        %758 = vst.msk [vmem:[%s232 + $0x68] sm:$0xff] %vm744, %v741
        %759 = vst.msk [vmem:[%s232 + $0x70] sm:$0xff] %vm744, %v742
        %760 = vst.msk [vmem:[%s232 + $0x78] sm:$0xff] %vm744, %v743
      $region44: #{_lambda_.5} parent=35 // pred_fallthru
        _
      %s761 = smul.u32 16, %s21
      %p762 = scmp.lt.s32.totalorder %s761, 31
      %s763 = scalar_select %p762, %s761, 31
      %s764 = smul.addr %s763, 8
      %s765 = scalar_lea.vmem %s4, %s764
      // Predicated region
      $region45: #{_lambda_.5} parent=35 // pred_check
        %p766 = pneg %p138
      $region46: #{_lambda_.5} parent=35 // pred_check_branch
        %768 = sbr.rel (%p766) target = $region48
      $region47: #{_lambda_.5} parent=35 // pred_region
        %s769 = smul.u32 16, %s21
      $region48: #{_lambda_.5} parent=35 // pred_fallthru
        _
    $region36: #{_lambda_.5} parent=5 // pred_fallthru
      _
    %p770 = scmp.le.s32.totalorder 2, %s12
    // Predicated region
    $region49: #{_lambda_.5} parent=5 // pred_check
      %p771 = pneg %p770
    $region50: #{_lambda_.5} parent=5 // pred_check_branch
      %773 = sbr.rel (%p771) target = $region52
    $region51: #{_lambda_.5} parent=5 // pred_region
      %s774 = ssub.s32 %s12, 2
      // Predicated region
      $region53: #{_lambda_.5} parent=51 // pred_check
        %p775 = pneg %p144
      $region54: #{_lambda_.5} parent=51 // pred_check_branch
        %777 = sbr.rel (%p775) target = $region56
      $region55: #{_lambda_.5} parent=51 // pred_region
        %s778 = smul.u32 16, %s23
        %p779 = scmp.lt.s32.totalorder %s778, 31
        %s780 = scalar_select %p779, %s778, 31
        %s781 = smul.addr %s780, 8
        %s782 = scalar_lea.vmem %s4, %s781
      $region56: #{_lambda_.5} parent=51 // pred_fallthru
        _
    $region52: #{_lambda_.5} parent=5 // pred_fallthru
      _
  $region6: #{_lambda_.5} parent=0 // loop_footer
    %s16 = sadd.s32 1, %s12
  $region7: #{_lambda_.5} parent=0 // loop_footer_branch
    %11 = sbr.rel target = $region3
  $region8: #{_lambda_.5} parent=0 // loop_exit
    _

// kernel: _lambda_.3
$region0: #{_lambda_.3}
  #allocation0 [shape = 'u32[]', space=smem, size = 0x4, offset = 0x4, fixed_abs, tag = 'smem constant byte address 0x4 - core index']
  #allocation1 [shape = 'u32[144,128]{1,0:T(1,128)}', space=vmem, size = 0x12000, scoped, tag = 'internal scratch']
  #allocation2 [shape = 'f32[128,64]{1,0:T(8,128)}', space=vmem, size = 0x10000, scoped, tag = 'scratch operand']
  %s0 = inlined_call_operand.vmem [shape: bf16[256,256], index: 0, kind: input, shape index: {}]
  %s1 = inlined_call_operand.vmem [shape: bf16[256,64], index: 1, kind: input, shape index: {}]
  %s2 = inlined_call_operand.vmem [shape: f32[1,64], index: 2, kind: input, shape index: {}]
  %s3 = inlined_call_operand.vmem [shape: bf16[256,64], index: 3, kind: output, shape index: {}]
  %s4 = sld [smem:[#allocation0]]
  $region53: #{_lambda_.3} parent=0
    _
  %s6 = ssub.s32 1, %s4
  %s7 = scalar_select 0, %s6, %s4
  loop: start=0, step=1, limit=4
  $region2: #{_lambda_.3} parent=0 // loop_pre_header
    _
  $region3: #{_lambda_.3} parent=0 // loop_header
    %s9 = sphi 0, %s13
    %p10 = scmp.ge.s32.totalorder %s9, 4
    %s16 = sphi 0, %s28
    %s17 = sphi 0, %s24
    %s18 = sphi 0, %s16
    %s19 = sphi 0, %s17
    %s20 = sphi 0, %s18
    %s21 = sphi 0, %s19
    %s33 = sphi 0, %s35
    %s36 = sphi 0, %s33
    %s37 = sphi 0, %s36
    %s53 = sphi 0, %s37
    %s57 = sphi 0, %s57
    %s59 = sphi 0, %s57
    %s60 = sphi 0, %s59
    %s74 = sphi 0, %s60
    %s78 = sphi 0, %s78
    %s80 = sphi 0, %s78
    %s81 = sphi 0, %s80
    %s95 = sphi 0, %s81
    %s101 = sphi 0, %s103
    %s104 = sphi 0, %s101
    %s105 = sphi 0, %s104
    %s121 = sphi 0, %s105
  $region4: #{_lambda_.3} parent=0 // loop_header_branch
    %12 = sbr.rel (%p10) target = $region8
  $region5: #{_lambda_.3} parent=0 // loop_body
    %s14 = ssub.s32 %s9, 1
    %s15 = ssub.s32 %s9, 2
    %s22 = sadd.s32 1, %s17
    %p23 = scmp.ge.s32.totalorder %s22, 1
    %s24 = scalar_select %p23, 0, %s22
    %s25 = sadd.s32 1, %s16
    %s26 = scalar_select %p23, %s25, %s16
    %p27 = scmp.ge.s32.totalorder %s26, 2
    %s28 = scalar_select %p27, 0, %s26
    %s29 = ssub.s32 %s16, %s28
    %s30 = ssub.s32 %s17, %s24
    %s31 = sor.u32 %s29, %s30
    %p32 = scmp.eq.s32.totalorder %s31, 0
    %s34 = sadd.s32 %s33, 1
    %s35 = scalar_select %p32, %s33, %s34
    %p38 = pneg %p32
    %p39 = scmp.eq.s32.totalorder %s9, 1
    %p40 = por %p38, %p39
    %p41 = scmp.ne.s32.totalorder %s33, %s36
    %p42 = scmp.eq.s32.totalorder %s9, 0
    %p43 = por %p41, %p42
    %p44 = scmp.ne.s32.totalorder %s33, %s36
    %p45 = scmp.eq.s32.totalorder %s14, 1
    %p46 = por %p44, %p45
    %p47 = scmp.ne.s32.totalorder %s36, %s37
    %p48 = scmp.eq.s32.totalorder %s14, 0
    %p49 = por %p47, %p48
    %p50 = scmp.ne.s32.totalorder %s36, %s37
    %p51 = scmp.eq.s32.totalorder %s15, 1
    %p52 = por %p50, %p51
    %p54 = scmp.ne.s32.totalorder %s37, %s53
    %p55 = scmp.eq.s32.totalorder %s15, 0
    %p56 = por %p54, %p55
    %s58 = sadd.s32 %s57, 1
    %p61 = scmp.eq.s32.totalorder %s9, 1
    %p62 = scmp.ne.s32.totalorder %s57, %s59
    %p63 = scmp.eq.s32.totalorder %s9, 0
    %p64 = por %p62, %p63
    %p65 = scmp.ne.s32.totalorder %s57, %s59
    %p66 = scmp.eq.s32.totalorder %s14, 1
    %p67 = por %p65, %p66
    %p68 = scmp.ne.s32.totalorder %s59, %s60
    %p69 = scmp.eq.s32.totalorder %s14, 0
    %p70 = por %p68, %p69
    %p71 = scmp.ne.s32.totalorder %s59, %s60
    %p72 = scmp.eq.s32.totalorder %s15, 1
    %p73 = por %p71, %p72
    %p75 = scmp.ne.s32.totalorder %s60, %s74
    %p76 = scmp.eq.s32.totalorder %s15, 0
    %p77 = por %p75, %p76
    %s79 = sadd.s32 %s78, 1
    %p82 = scmp.eq.s32.totalorder %s9, 1
    %p83 = scmp.ne.s32.totalorder %s78, %s80
    %p84 = scmp.eq.s32.totalorder %s9, 0
    %p85 = por %p83, %p84
    %p86 = scmp.ne.s32.totalorder %s78, %s80
    %p87 = scmp.eq.s32.totalorder %s14, 1
    %p88 = por %p86, %p87
    %p89 = scmp.ne.s32.totalorder %s80, %s81
    %p90 = scmp.eq.s32.totalorder %s14, 0
    %p91 = por %p89, %p90
    %p92 = scmp.ne.s32.totalorder %s80, %s81
    %p93 = scmp.eq.s32.totalorder %s15, 1
    %p94 = por %p92, %p93
    %p96 = scmp.ne.s32.totalorder %s81, %s95
    %p97 = scmp.eq.s32.totalorder %s15, 0
    %p98 = por %p96, %p97
    %s99 = ssub.s32 %s16, %s28
    %p100 = scmp.eq.s32.totalorder %s99, 0
    %s102 = sadd.s32 %s101, 1
    %s103 = scalar_select %p100, %s101, %s102
    %p106 = pneg %p100
    %p107 = scmp.eq.s32.totalorder %s9, 1
    %p108 = por %p106, %p107
    %p109 = scmp.ne.s32.totalorder %s101, %s104
    %p110 = scmp.eq.s32.totalorder %s9, 0
    %p111 = por %p109, %p110
    %p112 = scmp.ne.s32.totalorder %s101, %s104
    %p113 = scmp.eq.s32.totalorder %s14, 1
    %p114 = por %p112, %p113
    %p115 = scmp.ne.s32.totalorder %s104, %s105
    %p116 = scmp.eq.s32.totalorder %s14, 0
    %p117 = por %p115, %p116
    %p118 = scmp.ne.s32.totalorder %s104, %s105
    %p119 = scmp.eq.s32.totalorder %s15, 1
    %p120 = por %p118, %p119
    %p122 = scmp.ne.s32.totalorder %s105, %s121
    %p123 = scmp.eq.s32.totalorder %s15, 0
    %p124 = por %p122, %p123
    %p125 = scmp.le.s32.totalorder 1, %s9
    %p126 = scmp.lt.s32.totalorder %s9, 3
    %p127 = pnand %p125, %p126
    %p128 = pneg %p127
    // Predicated region
    $region9: #{_lambda_.3} parent=5 // pred_check
      _
    $region10: #{_lambda_.3} parent=5 // pred_check_branch
      %130 = sbr.rel (%p127) target = $region12
    $region11: #{_lambda_.3} parent=5 // pred_region
      %s131 = ssub.s32 %s9, 1
      // Predicated region
      $region13: #{_lambda_.3} parent=11 // pred_check
        %p132 = pneg %p70
      $region14: #{_lambda_.3} parent=11 // pred_check_branch
        %134 = sbr.rel (%p132) target = $region16
      $region15: #{_lambda_.3} parent=11 // pred_region
        _
      $region16: #{_lambda_.3} parent=11 // pred_fallthru
        _
      // Predicated region
      $region17: #{_lambda_.3} parent=11 // pred_check
        %p135 = pneg %p91
      $region18: #{_lambda_.3} parent=11 // pred_check_branch
        %137 = sbr.rel (%p135) target = $region20
      $region19: #{_lambda_.3} parent=11 // pred_region
        _
      $region20: #{_lambda_.3} parent=11 // pred_fallthru
        _
    $region12: #{_lambda_.3} parent=5 // pred_fallthru
      _
    %p138 = scmp.lt.s32.totalorder %s9, 2
    // Predicated region
    $region21: #{_lambda_.3} parent=5 // pred_check
      %p139 = pneg %p138
    $region22: #{_lambda_.3} parent=5 // pred_check_branch
      %141 = sbr.rel (%p139) target = $region24
    $region23: #{_lambda_.3} parent=5 // pred_region
      // Predicated region
      $region25: #{_lambda_.3} parent=23 // pred_check
        %p142 = pneg %p43
      $region26: #{_lambda_.3} parent=23 // pred_check_branch
        %144 = sbr.rel (%p142) target = $region28
      $region27: #{_lambda_.3} parent=23 // pred_region
        %s145 = smul.u32 16, %s16
        %s146 = smul.u32 2, %s17
        %p147 = scmp.lt.s32.totalorder %s145, 31
        %s148 = scalar_select %p147, %s145, 31
        %p149 = scmp.lt.s32.totalorder %s146, 1
        %s150 = scalar_select %p149, %s146, 1
        %s151 = smul.addr %s148, 2
        %s152 = sadd.s32 %s150, %s151
        %s153 = smul.addr %s152, 4
        %s154 = scalar_lea.vmem %s0, %s153
        %s155 = smul.u32 16, %s16
        %s156 = smul.u32 2, %s17
      $region28: #{_lambda_.3} parent=23 // pred_fallthru
        _
    $region24: #{_lambda_.3} parent=5 // pred_fallthru
      _
    %p157 = scmp.le.s32.totalorder 1, %s9
    %p158 = scmp.lt.s32.totalorder %s9, 3
    %p159 = pnand %p157, %p158
    %p160 = pneg %p159
    // Predicated region
    $region29: #{_lambda_.3} parent=5 // pred_check
      _
    $region30: #{_lambda_.3} parent=5 // pred_check_branch
      %162 = sbr.rel (%p159) target = $region32
    $region31: #{_lambda_.3} parent=5 // pred_region
      %s163 = ssub.s32 %s9, 1
      %s164 = smul.u32 16, %s18
      %s165 = smul.u32 2, %s19
      %p166 = scmp.lt.s32.totalorder %s164, 31
      %s167 = scalar_select %p166, %s164, 31
      %p168 = scmp.lt.s32.totalorder %s165, 1
      %s169 = scalar_select %p168, %s165, 1
      %s170 = smul.addr %s167, 2
      %s171 = sadd.s32 %s169, %s170
      %s172 = smul.addr %s171, 4
      %s173 = scalar_lea.vmem %s0, %s172
      %p174 = pneg %p49
      %p175 = pneg %p46
      %p176 = pneg %p70
      %p177 = pneg %p67
      %p178 = pneg %p91
      %p179 = pneg %p88
      %p180 = pneg %p117
      %p181 = pneg %p114
      %s182 = smul.u32 16, %s18
      %p183 = scmp.lt.s32.totalorder %s182, 31
      %s184 = scalar_select %p183, %s182, 31
      %s185 = smul.addr %s184, 4
      %s186 = scalar_lea.vmem %s3, %s185
      %s187 = smul.u32 16, %s18
      %s188 = smul.u32 2, %s19
      %p189 = scmp.lt.s32.totalorder %s187, 31
      %s190 = scalar_select %p189, %s187, 31
      %p191 = scmp.lt.s32.totalorder %s188, 1
      %s192 = scalar_select %p191, %s188, 1
      %s193 = smul.addr %s190, 2
      %s194 = sadd.s32 %s192, %s193
      %s195 = smul.addr %s194, 4
      %s196 = scalar_lea.vmem %s0, %s195
      %s197 = smul.u32 16, %s18
      %s198 = smul.u32 2, %s19
      %s199 = smul.u32 16, %s18
      %p200 = scmp.lt.s32.totalorder %s199, 31
      %s201 = scalar_select %p200, %s199, 31
      %s202 = smul.addr %s201, 4
      %s203 = scalar_lea.vmem %s3, %s202
      %s204 = smul.u32 16, %s18
      %p206 = scmp.eq.s32.totalorder %s19, 0
      // Predicated region
      $region33: #{_lambda_.3} parent=31 // pred_check
        %p207 = pneg %p206
      $region34: #{_lambda_.3} parent=31 // pred_check_branch
        %209 = sbr.rel (%p207) target = $region36
      $region35: #{_lambda_.3} parent=31 // pred_region
        %vm210 = vcmask 523264
        %211 = vst.msk [vmem:[#allocation2] sm:$0xff] %vm210, 0.0
        %212 = vst.msk [vmem:[#allocation2 + $0x8] sm:$0xff] %vm210, 0.0
        %213 = vst.msk [vmem:[#allocation2 + $0x10] sm:$0xff] %vm210, 0.0
        %214 = vst.msk [vmem:[#allocation2 + $0x18] sm:$0xff] %vm210, 0.0
        %215 = vst.msk [vmem:[#allocation2 + $0x20] sm:$0xff] %vm210, 0.0
        %216 = vst.msk [vmem:[#allocation2 + $0x28] sm:$0xff] %vm210, 0.0
        %217 = vst.msk [vmem:[#allocation2 + $0x30] sm:$0xff] %vm210, 0.0
        %218 = vst.msk [vmem:[#allocation2 + $0x38] sm:$0xff] %vm210, 0.0
        %219 = vst.msk [vmem:[#allocation2 + $0x40] sm:$0xff] %vm210, 0.0
        %220 = vst.msk [vmem:[#allocation2 + $0x48] sm:$0xff] %vm210, 0.0
        %221 = vst.msk [vmem:[#allocation2 + $0x50] sm:$0xff] %vm210, 0.0
        %222 = vst.msk [vmem:[#allocation2 + $0x58] sm:$0xff] %vm210, 0.0
        %223 = vst.msk [vmem:[#allocation2 + $0x60] sm:$0xff] %vm210, 0.0
        %224 = vst.msk [vmem:[#allocation2 + $0x68] sm:$0xff] %vm210, 0.0
        %225 = vst.msk [vmem:[#allocation2 + $0x70] sm:$0xff] %vm210, 0.0
        %226 = vst.msk [vmem:[#allocation2 + $0x78] sm:$0xff] %vm210, 0.0
      $region36: #{_lambda_.3} parent=31 // pred_fallthru
        _
      %s227 = smul.u32 %s19, 256
      %s228 = sshra.s32 %s227, 3
      %s229 = sand.u32 %s227, 7
      %s230 = smul.addr %s228, 4
      %s231 = scalar_lea.vmem %s1, %s230
      %v232 = vld [vmem:[%s231] sm:$0xf]
      %v233 = vld [vmem:[%s231 + $0x4] sm:$0xf]
      %v234 = vld [vmem:[%s231 + $0x8] sm:$0xf]
      %v235 = vld [vmem:[%s231 + $0xc] sm:$0xf]
      %v236 = vld [vmem:[%s231 + $0x10] sm:$0xf]
      %v237 = vld [vmem:[%s231 + $0x14] sm:$0xf]
      %v238 = vld [vmem:[%s231 + $0x18] sm:$0xf]
      %v239 = vld [vmem:[%s231 + $0x1c] sm:$0xf]
      %v240 = vld [vmem:[%s231 + $0x20] sm:$0xf]
      %v241 = vld [vmem:[%s231 + $0x24] sm:$0xf]
      %v242 = vld [vmem:[%s231 + $0x28] sm:$0xf]
      %v243 = vld [vmem:[%s231 + $0x2c] sm:$0xf]
      %v244 = vld [vmem:[%s231 + $0x30] sm:$0xf]
      %v245 = vld [vmem:[%s231 + $0x34] sm:$0xf]
      %v246 = vld [vmem:[%s231 + $0x38] sm:$0xf]
      %v247 = vld [vmem:[%s231 + $0x3c] sm:$0xf]
      %v248 = vld [vmem:[%s231 + $0x40] sm:$0xf]
      %v249 = vld [vmem:[%s231 + $0x44] sm:$0xf]
      %v250 = vld [vmem:[%s231 + $0x48] sm:$0xf]
      %v251 = vld [vmem:[%s231 + $0x4c] sm:$0xf]
      %v252 = vld [vmem:[%s231 + $0x50] sm:$0xf]
      %v253 = vld [vmem:[%s231 + $0x54] sm:$0xf]
      %v254 = vld [vmem:[%s231 + $0x58] sm:$0xf]
      %v255 = vld [vmem:[%s231 + $0x5c] sm:$0xf]
      %v256 = vld [vmem:[%s231 + $0x60] sm:$0xf]
      %v257 = vld [vmem:[%s231 + $0x64] sm:$0xf]
      %v258 = vld [vmem:[%s231 + $0x68] sm:$0xf]
      %v259 = vld [vmem:[%s231 + $0x6c] sm:$0xf]
      %v260 = vld [vmem:[%s231 + $0x70] sm:$0xf]
      %v261 = vld [vmem:[%s231 + $0x74] sm:$0xf]
      %v262 = vld [vmem:[%s231 + $0x78] sm:$0xf]
      %v263 = vld [vmem:[%s231 + $0x7c] sm:$0xf]
      %v264 = vld [vmem:[#allocation2] sm:$0xff]
      %v265 = vld [vmem:[#allocation2 + $0x8] sm:$0xff]
      %v266 = vld [vmem:[#allocation2 + $0x10] sm:$0xff]
      %v267 = vld [vmem:[#allocation2 + $0x18] sm:$0xff]
      %v268 = vld [vmem:[#allocation2 + $0x20] sm:$0xff]
      %v269 = vld [vmem:[#allocation2 + $0x28] sm:$0xff]
      %v270 = vld [vmem:[#allocation2 + $0x30] sm:$0xff]
      %v271 = vld [vmem:[#allocation2 + $0x38] sm:$0xff]
      %v272 = vld [vmem:[#allocation2 + $0x40] sm:$0xff]
      %v273 = vld [vmem:[#allocation2 + $0x48] sm:$0xff]
      %v274 = vld [vmem:[#allocation2 + $0x50] sm:$0xff]
      %v275 = vld [vmem:[#allocation2 + $0x58] sm:$0xff]
      %v276 = vld [vmem:[#allocation2 + $0x60] sm:$0xff]
      %v277 = vld [vmem:[#allocation2 + $0x68] sm:$0xff]
      %v278 = vld [vmem:[#allocation2 + $0x70] sm:$0xff]
      %v279 = vld [vmem:[#allocation2 + $0x78] sm:$0xff]
      %v280 = vld [vmem:[%s196] sm:$0xff]
      %v281 = vld [vmem:[%s196 + $0x8] sm:$0xff]
      %v282 = vld [vmem:[%s196 + $0x10] sm:$0xff]
      %v283 = vld [vmem:[%s196 + $0x18] sm:$0xff]
      %v284 = vld [vmem:[%s196 + $0x20] sm:$0xff]
      %v285 = vld [vmem:[%s196 + $0x28] sm:$0xff]
      %v286 = vld [vmem:[%s196 + $0x30] sm:$0xff]
      %v287 = vld [vmem:[%s196 + $0x38] sm:$0xff]
      %v288 = vld [vmem:[%s196 + $0x40] sm:$0xff]
      %v289 = vld [vmem:[%s196 + $0x48] sm:$0xff]
      %v290 = vld [vmem:[%s196 + $0x50] sm:$0xff]
      %v291 = vld [vmem:[%s196 + $0x58] sm:$0xff]
      %v292 = vld [vmem:[%s196 + $0x60] sm:$0xff]
      %v293 = vld [vmem:[%s196 + $0x68] sm:$0xff]
      %v294 = vld [vmem:[%s196 + $0x70] sm:$0xff]
      %v295 = vld [vmem:[%s196 + $0x78] sm:$0xff]
      %v312 = vunpack.c.l.b16 %v280
      %v313 = vunpack.c.h.b16 %v280
      %v314 = vunpack.c.l.b16 %v281
      %v315 = vunpack.c.h.b16 %v281
      %v316 = vunpack.c.l.b16 %v282
      %v317 = vunpack.c.h.b16 %v282
      %v318 = vunpack.c.l.b16 %v283
      %v319 = vunpack.c.h.b16 %v283
      %v320 = vunpack.c.l.b16 %v284
      %v321 = vunpack.c.h.b16 %v284
      %v322 = vunpack.c.l.b16 %v285
      %v323 = vunpack.c.h.b16 %v285
      %v324 = vunpack.c.l.b16 %v286
      %v325 = vunpack.c.h.b16 %v286
      %v326 = vunpack.c.l.b16 %v287
      %v327 = vunpack.c.h.b16 %v287
      %v328 = vunpack.c.l.b16 %v288
      %v329 = vunpack.c.h.b16 %v288
      %v330 = vunpack.c.l.b16 %v289
      %v331 = vunpack.c.h.b16 %v289
      %v332 = vunpack.c.l.b16 %v290
      %v333 = vunpack.c.h.b16 %v290
      %v334 = vunpack.c.l.b16 %v291
      %v335 = vunpack.c.h.b16 %v291
      %v336 = vunpack.c.l.b16 %v292
      %v337 = vunpack.c.h.b16 %v292
      %v338 = vunpack.c.l.b16 %v293
      %v339 = vunpack.c.h.b16 %v293
      %v340 = vunpack.c.l.b16 %v294
      %v341 = vunpack.c.h.b16 %v294
      %v342 = vunpack.c.l.b16 %v295
      %v343 = vunpack.c.h.b16 %v295
      %v344 = vpack.c.b16 %v314, %v312
      %v345 = vpack.c.b16 %v315, %v313
      %v346 = vpack.c.b16 %v318, %v316
      %v347 = vpack.c.b16 %v319, %v317
      %v348 = vpack.c.b16 %v322, %v320
      %v349 = vpack.c.b16 %v323, %v321
      %v350 = vpack.c.b16 %v326, %v324
      %v351 = vpack.c.b16 %v327, %v325
      %v352 = vpack.c.b16 %v330, %v328
      %v353 = vpack.c.b16 %v331, %v329
      %v354 = vpack.c.b16 %v334, %v332
      %v355 = vpack.c.b16 %v335, %v333
      %v356 = vpack.c.b16 %v338, %v336
      %v357 = vpack.c.b16 %v339, %v337
      %v358 = vpack.c.b16 %v342, %v340
      %v359 = vpack.c.b16 %v343, %v341
      %v408 = vunpack.c.l.b16 %v232
      %v409 = vunpack.c.l.b16 %v233
      %v410 = vunpack.c.l.b16 %v234
      %v411 = vunpack.c.l.b16 %v235
      %v412 = vunpack.c.l.b16 %v236
      %v413 = vunpack.c.l.b16 %v237
      %v414 = vunpack.c.l.b16 %v238
      %v415 = vunpack.c.l.b16 %v239
      %v416 = vunpack.c.l.b16 %v240
      %v417 = vunpack.c.l.b16 %v241
      %v418 = vunpack.c.l.b16 %v242
      %v419 = vunpack.c.l.b16 %v243
      %v420 = vunpack.c.l.b16 %v244
      %v421 = vunpack.c.l.b16 %v245
      %v422 = vunpack.c.l.b16 %v246
      %v423 = vunpack.c.l.b16 %v247
      %v424 = vunpack.c.l.b16 %v248
      %v425 = vunpack.c.l.b16 %v249
      %v426 = vunpack.c.l.b16 %v250
      %v427 = vunpack.c.l.b16 %v251
      %v428 = vunpack.c.l.b16 %v252
      %v429 = vunpack.c.l.b16 %v253
      %v430 = vunpack.c.l.b16 %v254
      %v431 = vunpack.c.l.b16 %v255
      %v432 = vunpack.c.l.b16 %v256
      %v433 = vunpack.c.l.b16 %v257
      %v434 = vunpack.c.l.b16 %v258
      %v435 = vunpack.c.l.b16 %v259
      %v436 = vunpack.c.l.b16 %v260
      %v437 = vunpack.c.l.b16 %v261
      %v438 = vunpack.c.l.b16 %v262
      %v439 = vunpack.c.l.b16 %v263
      %v440 = vpack.c.b16 %v409, %v408
      %v441 = vpack.c.b16 %v411, %v410
      %v442 = vpack.c.b16 %v413, %v412
      %v443 = vpack.c.b16 %v415, %v414
      %v444 = vpack.c.b16 %v417, %v416
      %v445 = vpack.c.b16 %v419, %v418
      %v446 = vpack.c.b16 %v421, %v420
      %v447 = vpack.c.b16 %v423, %v422
      %v448 = vpack.c.b16 %v425, %v424
      %v449 = vpack.c.b16 %v427, %v426
      %v450 = vpack.c.b16 %v429, %v428
      %v451 = vpack.c.b16 %v431, %v430
      %v452 = vpack.c.b16 %v433, %v432
      %v453 = vpack.c.b16 %v435, %v434
      %v454 = vpack.c.b16 %v437, %v436
      %v455 = vpack.c.b16 %v439, %v438
      %472 = vmatprep.subr.bf16.mxu0 0
      %473 = vmatpush1.bf16.msra.mxu0 %v447
      %474 = vmatprep.subr.bf16.mxu0 0
      %475 = vmatpush1.bf16.msra.mxu0 %v446
      %476 = vmatprep.subr.bf16.mxu0 0
      %477 = vmatpush1.bf16.msra.mxu0 %v445
      %478 = vmatprep.subr.bf16.mxu0 0
      %479 = vmatpush1.bf16.msra.mxu0 %v444
      %480 = vmatprep.subr.bf16.mxu0 0
      %481 = vmatpush1.bf16.msra.mxu0 %v443
      %482 = vmatprep.subr.bf16.mxu0 0
      %483 = vmatpush1.bf16.msra.mxu0 %v442
      %484 = vmatprep.subr.bf16.mxu0 0
      %485 = vmatpush1.bf16.msra.mxu0 %v441
      %486 = vmatprep.subr.bf16.mxu0 0
      %487 = vmatpush1.bf16.msra.mxu0 %v440
      %488 = vmatprep.subr.bf16.mxu0 0
      %489 = vmatpush2.bf16.msra.mxu0 %v455
      %490 = vmatprep.subr.bf16.mxu0 0
      %491 = vmatpush2.bf16.msra.mxu0 %v454
      %492 = vmatprep.subr.bf16.mxu0 0
      %493 = vmatpush2.bf16.msra.mxu0 %v453
      %494 = vmatprep.subr.bf16.mxu0 0
      %495 = vmatpush2.bf16.msra.mxu0 %v452
      %496 = vmatprep.subr.bf16.mxu0 0
      %497 = vmatpush2.bf16.msra.mxu0 %v451
      %498 = vmatprep.subr.bf16.mxu0 0
      %499 = vmatpush2.bf16.msra.mxu0 %v450
      %500 = vmatprep.subr.bf16.mxu0 0
      %501 = vmatpush2.bf16.msra.mxu0 %v449
      %502 = vmatprep.subr.bf16.mxu0 0
      %503 = vmatpush2.bf16.msra.mxu0 %v448
      %504 = vmatprep.mubr.bf16.mxu0 %v345
      %505 = vmatmul.mubr.bf16.gmra.mxu0 %v344
      %v506 = vpop.f32.mrf.mxu0
      %v507 = vadd.f32 0.0, %v506
      %v508 = vpop.f32.mrf.mxu0
      %v509 = vpop.f32.mrf.mxu0
      %v510 = vadd.f32 0.0, %v509
      %v511 = vpop.f32.mrf.mxu0
      %512 = vmatprep.mubr.bf16.mxu0 %v347
      %513 = vmatmul.mubr.bf16.gmra.mxu0 %v346
      %v514 = vpop.f32.mrf.mxu0
      %v515 = vadd.f32 0.0, %v514
      %v516 = vpop.f32.mrf.mxu0
      %v517 = vpop.f32.mrf.mxu0
      %v518 = vadd.f32 0.0, %v517
      %v519 = vpop.f32.mrf.mxu0
      %520 = vmatprep.mubr.bf16.mxu0 %v349
      %521 = vmatmul.mubr.bf16.gmra.mxu0 %v348
      %v522 = vpop.f32.mrf.mxu0
      %v523 = vadd.f32 0.0, %v522
      %v524 = vpop.f32.mrf.mxu0
      %v525 = vpop.f32.mrf.mxu0
      %v526 = vadd.f32 0.0, %v525
      %v527 = vpop.f32.mrf.mxu0
      %528 = vmatprep.mubr.bf16.mxu0 %v351
      %529 = vmatmul.mubr.bf16.gmra.mxu0 %v350
      %v530 = vpop.f32.mrf.mxu0
      %v531 = vadd.f32 0.0, %v530
      %v532 = vpop.f32.mrf.mxu0
      %v533 = vpop.f32.mrf.mxu0
      %v534 = vadd.f32 0.0, %v533
      %v535 = vpop.f32.mrf.mxu0
      %536 = vmatprep.mubr.bf16.mxu0 %v353
      %537 = vmatmul.mubr.bf16.gmra.mxu0 %v352
      %v538 = vpop.f32.mrf.mxu0
      %v539 = vadd.f32 0.0, %v538
      %v540 = vpop.f32.mrf.mxu0
      %v541 = vpop.f32.mrf.mxu0
      %v542 = vadd.f32 0.0, %v541
      %v543 = vpop.f32.mrf.mxu0
      %544 = vmatprep.mubr.bf16.mxu0 %v355
      %545 = vmatmul.mubr.bf16.gmra.mxu0 %v354
      %v546 = vpop.f32.mrf.mxu0
      %v547 = vadd.f32 0.0, %v546
      %v548 = vpop.f32.mrf.mxu0
      %v549 = vpop.f32.mrf.mxu0
      %v550 = vadd.f32 0.0, %v549
      %v551 = vpop.f32.mrf.mxu0
      %552 = vmatprep.mubr.bf16.mxu0 %v357
      %553 = vmatmul.mubr.bf16.gmra.mxu0 %v356
      %v554 = vpop.f32.mrf.mxu0
      %v555 = vadd.f32 0.0, %v554
      %v556 = vpop.f32.mrf.mxu0
      %v557 = vpop.f32.mrf.mxu0
      %v558 = vadd.f32 0.0, %v557
      %v559 = vpop.f32.mrf.mxu0
      %560 = vmatprep.mubr.bf16.mxu0 %v359
      %561 = vmatmul.mubr.bf16.gmra.mxu0 %v358
      %v562 = vpop.f32.mrf.mxu0
      %v563 = vadd.f32 0.0, %v562
      %v564 = vpop.f32.mrf.mxu0
      %v565 = vpop.f32.mrf.mxu0
      %v566 = vadd.f32 0.0, %v565
      %v567 = vpop.f32.mrf.mxu0
      %568 = vdwg.mxu0
      %v569 = vadd.f32 %v264, %v507
      %v570 = vadd.f32 %v265, %v510
      %v571 = vadd.f32 %v266, %v515
      %v572 = vadd.f32 %v267, %v518
      %v573 = vadd.f32 %v268, %v523
      %v574 = vadd.f32 %v269, %v526
      %v575 = vadd.f32 %v270, %v531
      %v576 = vadd.f32 %v271, %v534
      %v577 = vadd.f32 %v272, %v539
      %v578 = vadd.f32 %v273, %v542
      %v579 = vadd.f32 %v274, %v547
      %v580 = vadd.f32 %v275, %v550
      %v581 = vadd.f32 %v276, %v555
      %v582 = vadd.f32 %v277, %v558
      %v583 = vadd.f32 %v278, %v563
      %v584 = vadd.f32 %v279, %v566
      %vm585 = vcmask 523264
      %586 = vst.msk [vmem:[#allocation2] sm:$0xff] %vm585, %v569
      %587 = vst.msk [vmem:[#allocation2 + $0x8] sm:$0xff] %vm585, %v570
      %588 = vst.msk [vmem:[#allocation2 + $0x10] sm:$0xff] %vm585, %v571
      %589 = vst.msk [vmem:[#allocation2 + $0x18] sm:$0xff] %vm585, %v572
      %590 = vst.msk [vmem:[#allocation2 + $0x20] sm:$0xff] %vm585, %v573
      %591 = vst.msk [vmem:[#allocation2 + $0x28] sm:$0xff] %vm585, %v574
      %592 = vst.msk [vmem:[#allocation2 + $0x30] sm:$0xff] %vm585, %v575
      %593 = vst.msk [vmem:[#allocation2 + $0x38] sm:$0xff] %vm585, %v576
      %594 = vst.msk [vmem:[#allocation2 + $0x40] sm:$0xff] %vm585, %v577
      %595 = vst.msk [vmem:[#allocation2 + $0x48] sm:$0xff] %vm585, %v578
      %596 = vst.msk [vmem:[#allocation2 + $0x50] sm:$0xff] %vm585, %v579
      %597 = vst.msk [vmem:[#allocation2 + $0x58] sm:$0xff] %vm585, %v580
      %598 = vst.msk [vmem:[#allocation2 + $0x60] sm:$0xff] %vm585, %v581
      %599 = vst.msk [vmem:[#allocation2 + $0x68] sm:$0xff] %vm585, %v582
      %600 = vst.msk [vmem:[#allocation2 + $0x70] sm:$0xff] %vm585, %v583
      %601 = vst.msk [vmem:[#allocation2 + $0x78] sm:$0xff] %vm585, %v584
      // Predicated region
      $region37: #{_lambda_.3} parent=31 // pred_check
        %p602 = pneg %p206
      $region38: #{_lambda_.3} parent=31 // pred_check_branch
        %604 = sbr.rel (%p602) target = $region40
      $region39: #{_lambda_.3} parent=31 // pred_region
        %v605 = vld [vmem:[#allocation2] sm:$0xff]
        %v606 = vld [vmem:[#allocation2 + $0x8] sm:$0xff]
        %v607 = vld [vmem:[#allocation2 + $0x10] sm:$0xff]
        %v608 = vld [vmem:[#allocation2 + $0x18] sm:$0xff]
        %v609 = vld [vmem:[#allocation2 + $0x20] sm:$0xff]
        %v610 = vld [vmem:[#allocation2 + $0x28] sm:$0xff]
        %v611 = vld [vmem:[#allocation2 + $0x30] sm:$0xff]
        %v612 = vld [vmem:[#allocation2 + $0x38] sm:$0xff]
        %v613 = vld [vmem:[#allocation2 + $0x40] sm:$0xff]
        %v614 = vld [vmem:[#allocation2 + $0x48] sm:$0xff]
        %v615 = vld [vmem:[#allocation2 + $0x50] sm:$0xff]
        %v616 = vld [vmem:[#allocation2 + $0x58] sm:$0xff]
        %v617 = vld [vmem:[#allocation2 + $0x60] sm:$0xff]
        %v618 = vld [vmem:[#allocation2 + $0x68] sm:$0xff]
        %v619 = vld [vmem:[#allocation2 + $0x70] sm:$0xff]
        %v620 = vld [vmem:[#allocation2 + $0x78] sm:$0xff]
        %v621 = vld [vmem:[%s2] sm:$0x1]
        %v623 = vlaneseq
        %v624 = vshrl.u32 %v623, 7
        %v625 = vsub.s32 0, %v624
        %v626 = vrot.slane %v621, %v625
        %v628 = vadd.f32 %v605, %v626
        %v629 = vadd.f32 %v606, %v626
        %v630 = vadd.f32 %v607, %v626
        %v631 = vadd.f32 %v608, %v626
        %v632 = vadd.f32 %v609, %v626
        %v633 = vadd.f32 %v610, %v626
        %v634 = vadd.f32 %v611, %v626
        %v635 = vadd.f32 %v612, %v626
        %v636 = vadd.f32 %v613, %v626
        %v637 = vadd.f32 %v614, %v626
        %v638 = vadd.f32 %v615, %v626
        %v639 = vadd.f32 %v616, %v626
        %v640 = vadd.f32 %v617, %v626
        %v641 = vadd.f32 %v618, %v626
        %v642 = vadd.f32 %v619, %v626
        %v643 = vadd.f32 %v620, %v626
        %v644 = vmax.f32 %v628, 0.0
        %v645 = vmax.f32 %v629, 0.0
        %v646 = vmax.f32 %v630, 0.0
        %v647 = vmax.f32 %v631, 0.0
        %v648 = vmax.f32 %v632, 0.0
        %v649 = vmax.f32 %v633, 0.0
        %v650 = vmax.f32 %v634, 0.0
        %v651 = vmax.f32 %v635, 0.0
        %v652 = vmax.f32 %v636, 0.0
        %v653 = vmax.f32 %v637, 0.0
        %v654 = vmax.f32 %v638, 0.0
        %v655 = vmax.f32 %v639, 0.0
        %v656 = vmax.f32 %v640, 0.0
        %v657 = vmax.f32 %v641, 0.0
        %v658 = vmax.f32 %v642, 0.0
        %v659 = vmax.f32 %v643, 0.0
        %v660 = vpack.c.bf16 %v645, %v644
        %v661 = vpack.c.bf16 %v647, %v646
        %v662 = vpack.c.bf16 %v649, %v648
        %v663 = vpack.c.bf16 %v651, %v650
        %v664 = vpack.c.bf16 %v653, %v652
        %v665 = vpack.c.bf16 %v655, %v654
        %v666 = vpack.c.bf16 %v657, %v656
        %v667 = vpack.c.bf16 %v659, %v658
        %v676 = vunpack.c.l.b16 %v660
        %v677 = vunpack.c.h.b16 %v660
        %v678 = vunpack.c.l.b16 %v661
        %v679 = vunpack.c.h.b16 %v661
        %v680 = vunpack.c.l.b16 %v662
        %v681 = vunpack.c.h.b16 %v662
        %v682 = vunpack.c.l.b16 %v663
        %v683 = vunpack.c.h.b16 %v663
        %v684 = vunpack.c.l.b16 %v664
        %v685 = vunpack.c.h.b16 %v664
        %v686 = vunpack.c.l.b16 %v665
        %v687 = vunpack.c.h.b16 %v665
        %v688 = vunpack.c.l.b16 %v666
        %v689 = vunpack.c.h.b16 %v666
        %v690 = vunpack.c.l.b16 %v667
        %v691 = vunpack.c.h.b16 %v667
        %v692 = vpack.c.b16 %v676, %v676
        %v693 = vpack.c.b16 %v677, %v677
        %v694 = vpack.c.b16 %v678, %v678
        %v695 = vpack.c.b16 %v679, %v679
        %v696 = vpack.c.b16 %v680, %v680
        %v697 = vpack.c.b16 %v681, %v681
        %v698 = vpack.c.b16 %v682, %v682
        %v699 = vpack.c.b16 %v683, %v683
        %v700 = vpack.c.b16 %v684, %v684
        %v701 = vpack.c.b16 %v685, %v685
        %v702 = vpack.c.b16 %v686, %v686
        %v703 = vpack.c.b16 %v687, %v687
        %v704 = vpack.c.b16 %v688, %v688
        %v705 = vpack.c.b16 %v689, %v689
        %v706 = vpack.c.b16 %v690, %v690
        %v707 = vpack.c.b16 %v691, %v691
        %vm724 = vcmask 519168
        %725 = vst.msk [vmem:[%s203] sm:$0xf] %vm724, %v692
        %726 = vst.msk [vmem:[%s203 + $0x4] sm:$0xf] %vm724, %v693
        %727 = vst.msk [vmem:[%s203 + $0x8] sm:$0xf] %vm724, %v694
        %728 = vst.msk [vmem:[%s203 + $0xc] sm:$0xf] %vm724, %v695
        %729 = vst.msk [vmem:[%s203 + $0x10] sm:$0xf] %vm724, %v696
        %730 = vst.msk [vmem:[%s203 + $0x14] sm:$0xf] %vm724, %v697
        %731 = vst.msk [vmem:[%s203 + $0x18] sm:$0xf] %vm724, %v698
        %732 = vst.msk [vmem:[%s203 + $0x1c] sm:$0xf] %vm724, %v699
        %733 = vst.msk [vmem:[%s203 + $0x20] sm:$0xf] %vm724, %v700
        %734 = vst.msk [vmem:[%s203 + $0x24] sm:$0xf] %vm724, %v701
        %735 = vst.msk [vmem:[%s203 + $0x28] sm:$0xf] %vm724, %v702
        %736 = vst.msk [vmem:[%s203 + $0x2c] sm:$0xf] %vm724, %v703
        %737 = vst.msk [vmem:[%s203 + $0x30] sm:$0xf] %vm724, %v704
        %738 = vst.msk [vmem:[%s203 + $0x34] sm:$0xf] %vm724, %v705
        %739 = vst.msk [vmem:[%s203 + $0x38] sm:$0xf] %vm724, %v706
        %740 = vst.msk [vmem:[%s203 + $0x3c] sm:$0xf] %vm724, %v707
      $region40: #{_lambda_.3} parent=31 // pred_fallthru
        _
      %s741 = smul.u32 16, %s18
      %p742 = scmp.lt.s32.totalorder %s741, 31
      %s743 = scalar_select %p742, %s741, 31
      %s744 = smul.addr %s743, 4
      %s745 = scalar_lea.vmem %s3, %s744
      // Predicated region
      $region41: #{_lambda_.3} parent=31 // pred_check
        %p746 = pneg %p114
      $region42: #{_lambda_.3} parent=31 // pred_check_branch
        %748 = sbr.rel (%p746) target = $region44
      $region43: #{_lambda_.3} parent=31 // pred_region
        %s749 = smul.u32 16, %s18
      $region44: #{_lambda_.3} parent=31 // pred_fallthru
        _
    $region32: #{_lambda_.3} parent=5 // pred_fallthru
      _
    %p750 = scmp.le.s32.totalorder 2, %s9
    // Predicated region
    $region45: #{_lambda_.3} parent=5 // pred_check
      %p751 = pneg %p750
    $region46: #{_lambda_.3} parent=5 // pred_check_branch
      %753 = sbr.rel (%p751) target = $region48
    $region47: #{_lambda_.3} parent=5 // pred_region
      %s754 = ssub.s32 %s9, 2
      // Predicated region
      $region49: #{_lambda_.3} parent=47 // pred_check
        %p755 = pneg %p120
      $region50: #{_lambda_.3} parent=47 // pred_check_branch
        %757 = sbr.rel (%p755) target = $region52
      $region51: #{_lambda_.3} parent=47 // pred_region
        %s758 = smul.u32 16, %s20
        %p759 = scmp.lt.s32.totalorder %s758, 31
        %s760 = scalar_select %p759, %s758, 31
        %s761 = smul.addr %s760, 4
        %s762 = scalar_lea.vmem %s3, %s761
      $region52: #{_lambda_.3} parent=47 // pred_fallthru
        _
    $region48: #{_lambda_.3} parent=5 // pred_fallthru
      _
  $region6: #{_lambda_.3} parent=0 // loop_footer
    %s13 = sadd.s32 1, %s9
  $region7: #{_lambda_.3} parent=0 // loop_footer_branch
    %8 = sbr.rel target = $region3
  $region8: #{_lambda_.3} parent=0 // loop_exit
    _

// kernel: _lambda_.4
$region0: #{_lambda_.4}
  #allocation0 [shape = 'u32[]', space=smem, size = 0x4, offset = 0x4, fixed_abs, tag = 'smem constant byte address 0x4 - core index']
  #allocation1 [shape = 'u32[144,128]{1,0:T(1,128)}', space=vmem, size = 0x12000, scoped, tag = 'internal scratch']
  #allocation2 [shape = 'f32[128,32]{1,0:T(8,128)}', space=vmem, size = 0x10000, scoped, tag = 'scratch operand']
  %s0 = inlined_call_operand.vmem [shape: bf16[256,256], index: 0, kind: input, shape index: {}]
  %s1 = inlined_call_operand.vmem [shape: bf16[256,32], index: 1, kind: input, shape index: {}]
  %s2 = inlined_call_operand.vmem [shape: f32[1,32], index: 2, kind: input, shape index: {}]
  %s3 = inlined_call_operand.vmem [shape: bf16[256,32], index: 3, kind: output, shape index: {}]
  %s4 = sld [smem:[#allocation0]]
  $region53: #{_lambda_.4} parent=0
    _
  %s6 = ssub.s32 1, %s4
  %s7 = scalar_select 0, %s6, %s4
  loop: start=0, step=1, limit=4
  $region2: #{_lambda_.4} parent=0 // loop_pre_header
    _
  $region3: #{_lambda_.4} parent=0 // loop_header
    %s9 = sphi 0, %s13
    %p10 = scmp.ge.s32.totalorder %s9, 4
    %s16 = sphi 0, %s28
    %s17 = sphi 0, %s24
    %s18 = sphi 0, %s16
    %s19 = sphi 0, %s17
    %s20 = sphi 0, %s18
    %s21 = sphi 0, %s19
    %s33 = sphi 0, %s35
    %s36 = sphi 0, %s33
    %s37 = sphi 0, %s36
    %s53 = sphi 0, %s37
    %s57 = sphi 0, %s57
    %s59 = sphi 0, %s57
    %s60 = sphi 0, %s59
    %s74 = sphi 0, %s60
    %s78 = sphi 0, %s78
    %s80 = sphi 0, %s78
    %s81 = sphi 0, %s80
    %s95 = sphi 0, %s81
    %s101 = sphi 0, %s103
    %s104 = sphi 0, %s101
    %s105 = sphi 0, %s104
    %s121 = sphi 0, %s105
  $region4: #{_lambda_.4} parent=0 // loop_header_branch
    %12 = sbr.rel (%p10) target = $region8
  $region5: #{_lambda_.4} parent=0 // loop_body
    %s14 = ssub.s32 %s9, 1
    %s15 = ssub.s32 %s9, 2
    %s22 = sadd.s32 1, %s17
    %p23 = scmp.ge.s32.totalorder %s22, 1
    %s24 = scalar_select %p23, 0, %s22
    %s25 = sadd.s32 1, %s16
    %s26 = scalar_select %p23, %s25, %s16
    %p27 = scmp.ge.s32.totalorder %s26, 2
    %s28 = scalar_select %p27, 0, %s26
    %s29 = ssub.s32 %s16, %s28
    %s30 = ssub.s32 %s17, %s24
    %s31 = sor.u32 %s29, %s30
    %p32 = scmp.eq.s32.totalorder %s31, 0
    %s34 = sadd.s32 %s33, 1
    %s35 = scalar_select %p32, %s33, %s34
    %p38 = pneg %p32
    %p39 = scmp.eq.s32.totalorder %s9, 1
    %p40 = por %p38, %p39
    %p41 = scmp.ne.s32.totalorder %s33, %s36
    %p42 = scmp.eq.s32.totalorder %s9, 0
    %p43 = por %p41, %p42
    %p44 = scmp.ne.s32.totalorder %s33, %s36
    %p45 = scmp.eq.s32.totalorder %s14, 1
    %p46 = por %p44, %p45
    %p47 = scmp.ne.s32.totalorder %s36, %s37
    %p48 = scmp.eq.s32.totalorder %s14, 0
    %p49 = por %p47, %p48
    %p50 = scmp.ne.s32.totalorder %s36, %s37
    %p51 = scmp.eq.s32.totalorder %s15, 1
    %p52 = por %p50, %p51
    %p54 = scmp.ne.s32.totalorder %s37, %s53
    %p55 = scmp.eq.s32.totalorder %s15, 0
    %p56 = por %p54, %p55
    %s58 = sadd.s32 %s57, 1
    %p61 = scmp.eq.s32.totalorder %s9, 1
    %p62 = scmp.ne.s32.totalorder %s57, %s59
    %p63 = scmp.eq.s32.totalorder %s9, 0
    %p64 = por %p62, %p63
    %p65 = scmp.ne.s32.totalorder %s57, %s59
    %p66 = scmp.eq.s32.totalorder %s14, 1
    %p67 = por %p65, %p66
    %p68 = scmp.ne.s32.totalorder %s59, %s60
    %p69 = scmp.eq.s32.totalorder %s14, 0
    %p70 = por %p68, %p69
    %p71 = scmp.ne.s32.totalorder %s59, %s60
    %p72 = scmp.eq.s32.totalorder %s15, 1
    %p73 = por %p71, %p72
    %p75 = scmp.ne.s32.totalorder %s60, %s74
    %p76 = scmp.eq.s32.totalorder %s15, 0
    %p77 = por %p75, %p76
    %s79 = sadd.s32 %s78, 1
    %p82 = scmp.eq.s32.totalorder %s9, 1
    %p83 = scmp.ne.s32.totalorder %s78, %s80
    %p84 = scmp.eq.s32.totalorder %s9, 0
    %p85 = por %p83, %p84
    %p86 = scmp.ne.s32.totalorder %s78, %s80
    %p87 = scmp.eq.s32.totalorder %s14, 1
    %p88 = por %p86, %p87
    %p89 = scmp.ne.s32.totalorder %s80, %s81
    %p90 = scmp.eq.s32.totalorder %s14, 0
    %p91 = por %p89, %p90
    %p92 = scmp.ne.s32.totalorder %s80, %s81
    %p93 = scmp.eq.s32.totalorder %s15, 1
    %p94 = por %p92, %p93
    %p96 = scmp.ne.s32.totalorder %s81, %s95
    %p97 = scmp.eq.s32.totalorder %s15, 0
    %p98 = por %p96, %p97
    %s99 = ssub.s32 %s16, %s28
    %p100 = scmp.eq.s32.totalorder %s99, 0
    %s102 = sadd.s32 %s101, 1
    %s103 = scalar_select %p100, %s101, %s102
    %p106 = pneg %p100
    %p107 = scmp.eq.s32.totalorder %s9, 1
    %p108 = por %p106, %p107
    %p109 = scmp.ne.s32.totalorder %s101, %s104
    %p110 = scmp.eq.s32.totalorder %s9, 0
    %p111 = por %p109, %p110
    %p112 = scmp.ne.s32.totalorder %s101, %s104
    %p113 = scmp.eq.s32.totalorder %s14, 1
    %p114 = por %p112, %p113
    %p115 = scmp.ne.s32.totalorder %s104, %s105
    %p116 = scmp.eq.s32.totalorder %s14, 0
    %p117 = por %p115, %p116
    %p118 = scmp.ne.s32.totalorder %s104, %s105
    %p119 = scmp.eq.s32.totalorder %s15, 1
    %p120 = por %p118, %p119
    %p122 = scmp.ne.s32.totalorder %s105, %s121
    %p123 = scmp.eq.s32.totalorder %s15, 0
    %p124 = por %p122, %p123
    %p125 = scmp.le.s32.totalorder 1, %s9
    %p126 = scmp.lt.s32.totalorder %s9, 3
    %p127 = pnand %p125, %p126
    %p128 = pneg %p127
    // Predicated region
    $region9: #{_lambda_.4} parent=5 // pred_check
      _
    $region10: #{_lambda_.4} parent=5 // pred_check_branch
      %130 = sbr.rel (%p127) target = $region12
    $region11: #{_lambda_.4} parent=5 // pred_region
      %s131 = ssub.s32 %s9, 1
      // Predicated region
      $region13: #{_lambda_.4} parent=11 // pred_check
        %p132 = pneg %p70
      $region14: #{_lambda_.4} parent=11 // pred_check_branch
        %134 = sbr.rel (%p132) target = $region16
      $region15: #{_lambda_.4} parent=11 // pred_region
        _
      $region16: #{_lambda_.4} parent=11 // pred_fallthru
        _
      // Predicated region
      $region17: #{_lambda_.4} parent=11 // pred_check
        %p135 = pneg %p91
      $region18: #{_lambda_.4} parent=11 // pred_check_branch
        %137 = sbr.rel (%p135) target = $region20
      $region19: #{_lambda_.4} parent=11 // pred_region
        _
      $region20: #{_lambda_.4} parent=11 // pred_fallthru
        _
    $region12: #{_lambda_.4} parent=5 // pred_fallthru
      _
    %p138 = scmp.lt.s32.totalorder %s9, 2
    // Predicated region
    $region21: #{_lambda_.4} parent=5 // pred_check
      %p139 = pneg %p138
    $region22: #{_lambda_.4} parent=5 // pred_check_branch
      %141 = sbr.rel (%p139) target = $region24
    $region23: #{_lambda_.4} parent=5 // pred_region
      // Predicated region
      $region25: #{_lambda_.4} parent=23 // pred_check
        %p142 = pneg %p43
      $region26: #{_lambda_.4} parent=23 // pred_check_branch
        %144 = sbr.rel (%p142) target = $region28
      $region27: #{_lambda_.4} parent=23 // pred_region
        %s145 = smul.u32 16, %s16
        %s146 = smul.u32 2, %s17
        %p147 = scmp.lt.s32.totalorder %s145, 31
        %s148 = scalar_select %p147, %s145, 31
        %p149 = scmp.lt.s32.totalorder %s146, 1
        %s150 = scalar_select %p149, %s146, 1
        %s151 = smul.addr %s148, 2
        %s152 = sadd.s32 %s150, %s151
        %s153 = smul.addr %s152, 4
        %s154 = scalar_lea.vmem %s0, %s153
        %s155 = smul.u32 16, %s16
        %s156 = smul.u32 2, %s17
      $region28: #{_lambda_.4} parent=23 // pred_fallthru
        _
    $region24: #{_lambda_.4} parent=5 // pred_fallthru
      _
    %p157 = scmp.le.s32.totalorder 1, %s9
    %p158 = scmp.lt.s32.totalorder %s9, 3
    %p159 = pnand %p157, %p158
    %p160 = pneg %p159
    // Predicated region
    $region29: #{_lambda_.4} parent=5 // pred_check
      _
    $region30: #{_lambda_.4} parent=5 // pred_check_branch
      %162 = sbr.rel (%p159) target = $region32
    $region31: #{_lambda_.4} parent=5 // pred_region
      %s163 = ssub.s32 %s9, 1
      %s164 = smul.u32 16, %s18
      %s165 = smul.u32 2, %s19
      %p166 = scmp.lt.s32.totalorder %s164, 31
      %s167 = scalar_select %p166, %s164, 31
      %p168 = scmp.lt.s32.totalorder %s165, 1
      %s169 = scalar_select %p168, %s165, 1
      %s170 = smul.addr %s167, 2
      %s171 = sadd.s32 %s169, %s170
      %s172 = smul.addr %s171, 4
      %s173 = scalar_lea.vmem %s0, %s172
      %p174 = pneg %p49
      %p175 = pneg %p46
      %p176 = pneg %p70
      %p177 = pneg %p67
      %p178 = pneg %p91
      %p179 = pneg %p88
      %p180 = pneg %p117
      %p181 = pneg %p114
      %s182 = smul.u32 16, %s18
      %p183 = scmp.lt.s32.totalorder %s182, 31
      %s184 = scalar_select %p183, %s182, 31
      %s185 = smul.addr %s184, 4
      %s186 = scalar_lea.vmem %s3, %s185
      %s187 = smul.u32 16, %s18
      %s188 = smul.u32 2, %s19
      %p189 = scmp.lt.s32.totalorder %s187, 31
      %s190 = scalar_select %p189, %s187, 31
      %p191 = scmp.lt.s32.totalorder %s188, 1
      %s192 = scalar_select %p191, %s188, 1
      %s193 = smul.addr %s190, 2
      %s194 = sadd.s32 %s192, %s193
      %s195 = smul.addr %s194, 4
      %s196 = scalar_lea.vmem %s0, %s195
      %s197 = smul.u32 16, %s18
      %s198 = smul.u32 2, %s19
      %s199 = smul.u32 16, %s18
      %p200 = scmp.lt.s32.totalorder %s199, 31
      %s201 = scalar_select %p200, %s199, 31
      %s202 = smul.addr %s201, 4
      %s203 = scalar_lea.vmem %s3, %s202
      %s204 = smul.u32 16, %s18
      %p206 = scmp.eq.s32.totalorder %s19, 0
      // Predicated region
      $region33: #{_lambda_.4} parent=31 // pred_check
        %p207 = pneg %p206
      $region34: #{_lambda_.4} parent=31 // pred_check_branch
        %209 = sbr.rel (%p207) target = $region36
      $region35: #{_lambda_.4} parent=31 // pred_region
        %vm210 = vcmask 261120
        %211 = vst.msk [vmem:[#allocation2] sm:$0xff] %vm210, 0.0
        %212 = vst.msk [vmem:[#allocation2 + $0x8] sm:$0xff] %vm210, 0.0
        %213 = vst.msk [vmem:[#allocation2 + $0x10] sm:$0xff] %vm210, 0.0
        %214 = vst.msk [vmem:[#allocation2 + $0x18] sm:$0xff] %vm210, 0.0
        %215 = vst.msk [vmem:[#allocation2 + $0x20] sm:$0xff] %vm210, 0.0
        %216 = vst.msk [vmem:[#allocation2 + $0x28] sm:$0xff] %vm210, 0.0
        %217 = vst.msk [vmem:[#allocation2 + $0x30] sm:$0xff] %vm210, 0.0
        %218 = vst.msk [vmem:[#allocation2 + $0x38] sm:$0xff] %vm210, 0.0
        %219 = vst.msk [vmem:[#allocation2 + $0x40] sm:$0xff] %vm210, 0.0
        %220 = vst.msk [vmem:[#allocation2 + $0x48] sm:$0xff] %vm210, 0.0
        %221 = vst.msk [vmem:[#allocation2 + $0x50] sm:$0xff] %vm210, 0.0
        %222 = vst.msk [vmem:[#allocation2 + $0x58] sm:$0xff] %vm210, 0.0
        %223 = vst.msk [vmem:[#allocation2 + $0x60] sm:$0xff] %vm210, 0.0
        %224 = vst.msk [vmem:[#allocation2 + $0x68] sm:$0xff] %vm210, 0.0
        %225 = vst.msk [vmem:[#allocation2 + $0x70] sm:$0xff] %vm210, 0.0
        %226 = vst.msk [vmem:[#allocation2 + $0x78] sm:$0xff] %vm210, 0.0
      $region36: #{_lambda_.4} parent=31 // pred_fallthru
        _
      %s227 = smul.u32 %s19, 256
      %s228 = sshra.s32 %s227, 3
      %s229 = sand.u32 %s227, 7
      %s230 = smul.addr %s228, 4
      %s231 = scalar_lea.vmem %s1, %s230
      %v232 = vld [vmem:[%s231] sm:$0xf]
      %v233 = vld [vmem:[%s231 + $0x4] sm:$0xf]
      %v234 = vld [vmem:[%s231 + $0x8] sm:$0xf]
      %v235 = vld [vmem:[%s231 + $0xc] sm:$0xf]
      %v236 = vld [vmem:[%s231 + $0x10] sm:$0xf]
      %v237 = vld [vmem:[%s231 + $0x14] sm:$0xf]
      %v238 = vld [vmem:[%s231 + $0x18] sm:$0xf]
      %v239 = vld [vmem:[%s231 + $0x1c] sm:$0xf]
      %v240 = vld [vmem:[%s231 + $0x20] sm:$0xf]
      %v241 = vld [vmem:[%s231 + $0x24] sm:$0xf]
      %v242 = vld [vmem:[%s231 + $0x28] sm:$0xf]
      %v243 = vld [vmem:[%s231 + $0x2c] sm:$0xf]
      %v244 = vld [vmem:[%s231 + $0x30] sm:$0xf]
      %v245 = vld [vmem:[%s231 + $0x34] sm:$0xf]
      %v246 = vld [vmem:[%s231 + $0x38] sm:$0xf]
      %v247 = vld [vmem:[%s231 + $0x3c] sm:$0xf]
      %v248 = vld [vmem:[%s231 + $0x40] sm:$0xf]
      %v249 = vld [vmem:[%s231 + $0x44] sm:$0xf]
      %v250 = vld [vmem:[%s231 + $0x48] sm:$0xf]
      %v251 = vld [vmem:[%s231 + $0x4c] sm:$0xf]
      %v252 = vld [vmem:[%s231 + $0x50] sm:$0xf]
      %v253 = vld [vmem:[%s231 + $0x54] sm:$0xf]
      %v254 = vld [vmem:[%s231 + $0x58] sm:$0xf]
      %v255 = vld [vmem:[%s231 + $0x5c] sm:$0xf]
      %v256 = vld [vmem:[%s231 + $0x60] sm:$0xf]
      %v257 = vld [vmem:[%s231 + $0x64] sm:$0xf]
      %v258 = vld [vmem:[%s231 + $0x68] sm:$0xf]
      %v259 = vld [vmem:[%s231 + $0x6c] sm:$0xf]
      %v260 = vld [vmem:[%s231 + $0x70] sm:$0xf]
      %v261 = vld [vmem:[%s231 + $0x74] sm:$0xf]
      %v262 = vld [vmem:[%s231 + $0x78] sm:$0xf]
      %v263 = vld [vmem:[%s231 + $0x7c] sm:$0xf]
      %v264 = vld [vmem:[#allocation2] sm:$0xff]
      %v265 = vld [vmem:[#allocation2 + $0x8] sm:$0xff]
      %v266 = vld [vmem:[#allocation2 + $0x10] sm:$0xff]
      %v267 = vld [vmem:[#allocation2 + $0x18] sm:$0xff]
      %v268 = vld [vmem:[#allocation2 + $0x20] sm:$0xff]
      %v269 = vld [vmem:[#allocation2 + $0x28] sm:$0xff]
      %v270 = vld [vmem:[#allocation2 + $0x30] sm:$0xff]
      %v271 = vld [vmem:[#allocation2 + $0x38] sm:$0xff]
      %v272 = vld [vmem:[#allocation2 + $0x40] sm:$0xff]
      %v273 = vld [vmem:[#allocation2 + $0x48] sm:$0xff]
      %v274 = vld [vmem:[#allocation2 + $0x50] sm:$0xff]
      %v275 = vld [vmem:[#allocation2 + $0x58] sm:$0xff]
      %v276 = vld [vmem:[#allocation2 + $0x60] sm:$0xff]
      %v277 = vld [vmem:[#allocation2 + $0x68] sm:$0xff]
      %v278 = vld [vmem:[#allocation2 + $0x70] sm:$0xff]
      %v279 = vld [vmem:[#allocation2 + $0x78] sm:$0xff]
      %v280 = vld [vmem:[%s196] sm:$0xff]
      %v281 = vld [vmem:[%s196 + $0x8] sm:$0xff]
      %v282 = vld [vmem:[%s196 + $0x10] sm:$0xff]
      %v283 = vld [vmem:[%s196 + $0x18] sm:$0xff]
      %v284 = vld [vmem:[%s196 + $0x20] sm:$0xff]
      %v285 = vld [vmem:[%s196 + $0x28] sm:$0xff]
      %v286 = vld [vmem:[%s196 + $0x30] sm:$0xff]
      %v287 = vld [vmem:[%s196 + $0x38] sm:$0xff]
      %v288 = vld [vmem:[%s196 + $0x40] sm:$0xff]
      %v289 = vld [vmem:[%s196 + $0x48] sm:$0xff]
      %v290 = vld [vmem:[%s196 + $0x50] sm:$0xff]
      %v291 = vld [vmem:[%s196 + $0x58] sm:$0xff]
      %v292 = vld [vmem:[%s196 + $0x60] sm:$0xff]
      %v293 = vld [vmem:[%s196 + $0x68] sm:$0xff]
      %v294 = vld [vmem:[%s196 + $0x70] sm:$0xff]
      %v295 = vld [vmem:[%s196 + $0x78] sm:$0xff]
      %v312 = vunpack.c.l.b16 %v280
      %v313 = vunpack.c.h.b16 %v280
      %v314 = vunpack.c.l.b16 %v281
      %v315 = vunpack.c.h.b16 %v281
      %v316 = vunpack.c.l.b16 %v282
      %v317 = vunpack.c.h.b16 %v282
      %v318 = vunpack.c.l.b16 %v283
      %v319 = vunpack.c.h.b16 %v283
      %v320 = vunpack.c.l.b16 %v284
      %v321 = vunpack.c.h.b16 %v284
      %v322 = vunpack.c.l.b16 %v285
      %v323 = vunpack.c.h.b16 %v285
      %v324 = vunpack.c.l.b16 %v286
      %v325 = vunpack.c.h.b16 %v286
      %v326 = vunpack.c.l.b16 %v287
      %v327 = vunpack.c.h.b16 %v287
      %v328 = vunpack.c.l.b16 %v288
      %v329 = vunpack.c.h.b16 %v288
      %v330 = vunpack.c.l.b16 %v289
      %v331 = vunpack.c.h.b16 %v289
      %v332 = vunpack.c.l.b16 %v290
      %v333 = vunpack.c.h.b16 %v290
      %v334 = vunpack.c.l.b16 %v291
      %v335 = vunpack.c.h.b16 %v291
      %v336 = vunpack.c.l.b16 %v292
      %v337 = vunpack.c.h.b16 %v292
      %v338 = vunpack.c.l.b16 %v293
      %v339 = vunpack.c.h.b16 %v293
      %v340 = vunpack.c.l.b16 %v294
      %v341 = vunpack.c.h.b16 %v294
      %v342 = vunpack.c.l.b16 %v295
      %v343 = vunpack.c.h.b16 %v295
      %v344 = vpack.c.b16 %v314, %v312
      %v345 = vpack.c.b16 %v315, %v313
      %v346 = vpack.c.b16 %v318, %v316
      %v347 = vpack.c.b16 %v319, %v317
      %v348 = vpack.c.b16 %v322, %v320
      %v349 = vpack.c.b16 %v323, %v321
      %v350 = vpack.c.b16 %v326, %v324
      %v351 = vpack.c.b16 %v327, %v325
      %v352 = vpack.c.b16 %v330, %v328
      %v353 = vpack.c.b16 %v331, %v329
      %v354 = vpack.c.b16 %v334, %v332
      %v355 = vpack.c.b16 %v335, %v333
      %v356 = vpack.c.b16 %v338, %v336
      %v357 = vpack.c.b16 %v339, %v337
      %v358 = vpack.c.b16 %v342, %v340
      %v359 = vpack.c.b16 %v343, %v341
      %v408 = vunpack.c.l.b16 %v232
      %v409 = vunpack.c.l.b16 %v233
      %v410 = vunpack.c.l.b16 %v234
      %v411 = vunpack.c.l.b16 %v235
      %v412 = vunpack.c.l.b16 %v236
      %v413 = vunpack.c.l.b16 %v237
      %v414 = vunpack.c.l.b16 %v238
      %v415 = vunpack.c.l.b16 %v239
      %v416 = vunpack.c.l.b16 %v240
      %v417 = vunpack.c.l.b16 %v241
      %v418 = vunpack.c.l.b16 %v242
      %v419 = vunpack.c.l.b16 %v243
      %v420 = vunpack.c.l.b16 %v244
      %v421 = vunpack.c.l.b16 %v245
      %v422 = vunpack.c.l.b16 %v246
      %v423 = vunpack.c.l.b16 %v247
      %v424 = vunpack.c.l.b16 %v248
      %v425 = vunpack.c.l.b16 %v249
      %v426 = vunpack.c.l.b16 %v250
      %v427 = vunpack.c.l.b16 %v251
      %v428 = vunpack.c.l.b16 %v252
      %v429 = vunpack.c.l.b16 %v253
      %v430 = vunpack.c.l.b16 %v254
      %v431 = vunpack.c.l.b16 %v255
      %v432 = vunpack.c.l.b16 %v256
      %v433 = vunpack.c.l.b16 %v257
      %v434 = vunpack.c.l.b16 %v258
      %v435 = vunpack.c.l.b16 %v259
      %v436 = vunpack.c.l.b16 %v260
      %v437 = vunpack.c.l.b16 %v261
      %v438 = vunpack.c.l.b16 %v262
      %v439 = vunpack.c.l.b16 %v263
      %v440 = vpack.c.b16 %v409, %v408
      %v441 = vpack.c.b16 %v411, %v410
      %v442 = vpack.c.b16 %v413, %v412
      %v443 = vpack.c.b16 %v415, %v414
      %v444 = vpack.c.b16 %v417, %v416
      %v445 = vpack.c.b16 %v419, %v418
      %v446 = vpack.c.b16 %v421, %v420
      %v447 = vpack.c.b16 %v423, %v422
      %v448 = vpack.c.b16 %v425, %v424
      %v449 = vpack.c.b16 %v427, %v426
      %v450 = vpack.c.b16 %v429, %v428
      %v451 = vpack.c.b16 %v431, %v430
      %v452 = vpack.c.b16 %v433, %v432
      %v453 = vpack.c.b16 %v435, %v434
      %v454 = vpack.c.b16 %v437, %v436
      %v455 = vpack.c.b16 %v439, %v438
      %472 = vmatprep.subr.bf16.mxu0 0
      %473 = vmatpush1.bf16.msra.mxu0 %v447
      %474 = vmatprep.subr.bf16.mxu0 0
      %475 = vmatpush1.bf16.msra.mxu0 %v446
      %476 = vmatprep.subr.bf16.mxu0 0
      %477 = vmatpush1.bf16.msra.mxu0 %v445
      %478 = vmatprep.subr.bf16.mxu0 0
      %479 = vmatpush1.bf16.msra.mxu0 %v444
      %480 = vmatprep.subr.bf16.mxu0 0
      %481 = vmatpush1.bf16.msra.mxu0 %v443
      %482 = vmatprep.subr.bf16.mxu0 0
      %483 = vmatpush1.bf16.msra.mxu0 %v442
      %484 = vmatprep.subr.bf16.mxu0 0
      %485 = vmatpush1.bf16.msra.mxu0 %v441
      %486 = vmatprep.subr.bf16.mxu0 0
      %487 = vmatpush1.bf16.msra.mxu0 %v440
      %488 = vmatprep.subr.bf16.mxu0 0
      %489 = vmatpush2.bf16.msra.mxu0 %v455
      %490 = vmatprep.subr.bf16.mxu0 0
      %491 = vmatpush2.bf16.msra.mxu0 %v454
      %492 = vmatprep.subr.bf16.mxu0 0
      %493 = vmatpush2.bf16.msra.mxu0 %v453
      %494 = vmatprep.subr.bf16.mxu0 0
      %495 = vmatpush2.bf16.msra.mxu0 %v452
      %496 = vmatprep.subr.bf16.mxu0 0
      %497 = vmatpush2.bf16.msra.mxu0 %v451
      %498 = vmatprep.subr.bf16.mxu0 0
      %499 = vmatpush2.bf16.msra.mxu0 %v450
      %500 = vmatprep.subr.bf16.mxu0 0
      %501 = vmatpush2.bf16.msra.mxu0 %v449
      %502 = vmatprep.subr.bf16.mxu0 0
      %503 = vmatpush2.bf16.msra.mxu0 %v448
      %504 = vmatprep.mubr.bf16.mxu0 %v345
      %505 = vmatmul.mubr.bf16.gmra.mxu0 %v344
      %v506 = vpop.f32.mrf.mxu0
      %v507 = vadd.f32 0.0, %v506
      %v508 = vpop.f32.mrf.mxu0
      %v509 = vpop.f32.mrf.mxu0
      %v510 = vadd.f32 0.0, %v509
      %v511 = vpop.f32.mrf.mxu0
      %512 = vmatprep.mubr.bf16.mxu0 %v347
      %513 = vmatmul.mubr.bf16.gmra.mxu0 %v346
      %v514 = vpop.f32.mrf.mxu0
      %v515 = vadd.f32 0.0, %v514
      %v516 = vpop.f32.mrf.mxu0
      %v517 = vpop.f32.mrf.mxu0
      %v518 = vadd.f32 0.0, %v517
      %v519 = vpop.f32.mrf.mxu0
      %520 = vmatprep.mubr.bf16.mxu0 %v349
      %521 = vmatmul.mubr.bf16.gmra.mxu0 %v348
      %v522 = vpop.f32.mrf.mxu0
      %v523 = vadd.f32 0.0, %v522
      %v524 = vpop.f32.mrf.mxu0
      %v525 = vpop.f32.mrf.mxu0
      %v526 = vadd.f32 0.0, %v525
      %v527 = vpop.f32.mrf.mxu0
      %528 = vmatprep.mubr.bf16.mxu0 %v351
      %529 = vmatmul.mubr.bf16.gmra.mxu0 %v350
      %v530 = vpop.f32.mrf.mxu0
      %v531 = vadd.f32 0.0, %v530
      %v532 = vpop.f32.mrf.mxu0
      %v533 = vpop.f32.mrf.mxu0
      %v534 = vadd.f32 0.0, %v533
      %v535 = vpop.f32.mrf.mxu0
      %536 = vmatprep.mubr.bf16.mxu0 %v353
      %537 = vmatmul.mubr.bf16.gmra.mxu0 %v352
      %v538 = vpop.f32.mrf.mxu0
      %v539 = vadd.f32 0.0, %v538
      %v540 = vpop.f32.mrf.mxu0
      %v541 = vpop.f32.mrf.mxu0
      %v542 = vadd.f32 0.0, %v541
      %v543 = vpop.f32.mrf.mxu0
      %544 = vmatprep.mubr.bf16.mxu0 %v355
      %545 = vmatmul.mubr.bf16.gmra.mxu0 %v354
      %v546 = vpop.f32.mrf.mxu0
      %v547 = vadd.f32 0.0, %v546
      %v548 = vpop.f32.mrf.mxu0
      %v549 = vpop.f32.mrf.mxu0
      %v550 = vadd.f32 0.0, %v549
      %v551 = vpop.f32.mrf.mxu0
      %552 = vmatprep.mubr.bf16.mxu0 %v357
      %553 = vmatmul.mubr.bf16.gmra.mxu0 %v356
      %v554 = vpop.f32.mrf.mxu0
      %v555 = vadd.f32 0.0, %v554
      %v556 = vpop.f32.mrf.mxu0
      %v557 = vpop.f32.mrf.mxu0
      %v558 = vadd.f32 0.0, %v557
      %v559 = vpop.f32.mrf.mxu0
      %560 = vmatprep.mubr.bf16.mxu0 %v359
      %561 = vmatmul.mubr.bf16.gmra.mxu0 %v358
      %v562 = vpop.f32.mrf.mxu0
      %v563 = vadd.f32 0.0, %v562
      %v564 = vpop.f32.mrf.mxu0
      %v565 = vpop.f32.mrf.mxu0
      %v566 = vadd.f32 0.0, %v565
      %v567 = vpop.f32.mrf.mxu0
      %568 = vdwg.mxu0
      %v569 = vadd.f32 %v264, %v507
      %v570 = vadd.f32 %v265, %v510
      %v571 = vadd.f32 %v266, %v515
      %v572 = vadd.f32 %v267, %v518
      %v573 = vadd.f32 %v268, %v523
      %v574 = vadd.f32 %v269, %v526
      %v575 = vadd.f32 %v270, %v531
      %v576 = vadd.f32 %v271, %v534
      %v577 = vadd.f32 %v272, %v539
      %v578 = vadd.f32 %v273, %v542
      %v579 = vadd.f32 %v274, %v547
      %v580 = vadd.f32 %v275, %v550
      %v581 = vadd.f32 %v276, %v555
      %v582 = vadd.f32 %v277, %v558
      %v583 = vadd.f32 %v278, %v563
      %v584 = vadd.f32 %v279, %v566
      %vm585 = vcmask 261120
      %586 = vst.msk [vmem:[#allocation2] sm:$0xff] %vm585, %v569
      %587 = vst.msk [vmem:[#allocation2 + $0x8] sm:$0xff] %vm585, %v570
      %588 = vst.msk [vmem:[#allocation2 + $0x10] sm:$0xff] %vm585, %v571
      %589 = vst.msk [vmem:[#allocation2 + $0x18] sm:$0xff] %vm585, %v572
      %590 = vst.msk [vmem:[#allocation2 + $0x20] sm:$0xff] %vm585, %v573
      %591 = vst.msk [vmem:[#allocation2 + $0x28] sm:$0xff] %vm585, %v574
      %592 = vst.msk [vmem:[#allocation2 + $0x30] sm:$0xff] %vm585, %v575
      %593 = vst.msk [vmem:[#allocation2 + $0x38] sm:$0xff] %vm585, %v576
      %594 = vst.msk [vmem:[#allocation2 + $0x40] sm:$0xff] %vm585, %v577
      %595 = vst.msk [vmem:[#allocation2 + $0x48] sm:$0xff] %vm585, %v578
      %596 = vst.msk [vmem:[#allocation2 + $0x50] sm:$0xff] %vm585, %v579
      %597 = vst.msk [vmem:[#allocation2 + $0x58] sm:$0xff] %vm585, %v580
      %598 = vst.msk [vmem:[#allocation2 + $0x60] sm:$0xff] %vm585, %v581
      %599 = vst.msk [vmem:[#allocation2 + $0x68] sm:$0xff] %vm585, %v582
      %600 = vst.msk [vmem:[#allocation2 + $0x70] sm:$0xff] %vm585, %v583
      %601 = vst.msk [vmem:[#allocation2 + $0x78] sm:$0xff] %vm585, %v584
      // Predicated region
      $region37: #{_lambda_.4} parent=31 // pred_check
        %p602 = pneg %p206
      $region38: #{_lambda_.4} parent=31 // pred_check_branch
        %604 = sbr.rel (%p602) target = $region40
      $region39: #{_lambda_.4} parent=31 // pred_region
        %v605 = vld [vmem:[#allocation2] sm:$0xff]
        %v606 = vld [vmem:[#allocation2 + $0x8] sm:$0xff]
        %v607 = vld [vmem:[#allocation2 + $0x10] sm:$0xff]
        %v608 = vld [vmem:[#allocation2 + $0x18] sm:$0xff]
        %v609 = vld [vmem:[#allocation2 + $0x20] sm:$0xff]
        %v610 = vld [vmem:[#allocation2 + $0x28] sm:$0xff]
        %v611 = vld [vmem:[#allocation2 + $0x30] sm:$0xff]
        %v612 = vld [vmem:[#allocation2 + $0x38] sm:$0xff]
        %v613 = vld [vmem:[#allocation2 + $0x40] sm:$0xff]
        %v614 = vld [vmem:[#allocation2 + $0x48] sm:$0xff]
        %v615 = vld [vmem:[#allocation2 + $0x50] sm:$0xff]
        %v616 = vld [vmem:[#allocation2 + $0x58] sm:$0xff]
        %v617 = vld [vmem:[#allocation2 + $0x60] sm:$0xff]
        %v618 = vld [vmem:[#allocation2 + $0x68] sm:$0xff]
        %v619 = vld [vmem:[#allocation2 + $0x70] sm:$0xff]
        %v620 = vld [vmem:[#allocation2 + $0x78] sm:$0xff]
        %v621 = vld [vmem:[%s2] sm:$0x1]
        %v623 = vlaneseq
        %v624 = vshrl.u32 %v623, 7
        %v625 = vsub.s32 0, %v624
        %v626 = vrot.slane %v621, %v625
        %v628 = vadd.f32 %v605, %v626
        %v629 = vadd.f32 %v606, %v626
        %v630 = vadd.f32 %v607, %v626
        %v631 = vadd.f32 %v608, %v626
        %v632 = vadd.f32 %v609, %v626
        %v633 = vadd.f32 %v610, %v626
        %v634 = vadd.f32 %v611, %v626
        %v635 = vadd.f32 %v612, %v626
        %v636 = vadd.f32 %v613, %v626
        %v637 = vadd.f32 %v614, %v626
        %v638 = vadd.f32 %v615, %v626
        %v639 = vadd.f32 %v616, %v626
        %v640 = vadd.f32 %v617, %v626
        %v641 = vadd.f32 %v618, %v626
        %v642 = vadd.f32 %v619, %v626
        %v643 = vadd.f32 %v620, %v626
        %v644 = vmax.f32 %v628, 0.0
        %v645 = vmax.f32 %v629, 0.0
        %v646 = vmax.f32 %v630, 0.0
        %v647 = vmax.f32 %v631, 0.0
        %v648 = vmax.f32 %v632, 0.0
        %v649 = vmax.f32 %v633, 0.0
        %v650 = vmax.f32 %v634, 0.0
        %v651 = vmax.f32 %v635, 0.0
        %v652 = vmax.f32 %v636, 0.0
        %v653 = vmax.f32 %v637, 0.0
        %v654 = vmax.f32 %v638, 0.0
        %v655 = vmax.f32 %v639, 0.0
        %v656 = vmax.f32 %v640, 0.0
        %v657 = vmax.f32 %v641, 0.0
        %v658 = vmax.f32 %v642, 0.0
        %v659 = vmax.f32 %v643, 0.0
        %v660 = vpack.c.bf16 %v645, %v644
        %v661 = vpack.c.bf16 %v647, %v646
        %v662 = vpack.c.bf16 %v649, %v648
        %v663 = vpack.c.bf16 %v651, %v650
        %v664 = vpack.c.bf16 %v653, %v652
        %v665 = vpack.c.bf16 %v655, %v654
        %v666 = vpack.c.bf16 %v657, %v656
        %v667 = vpack.c.bf16 %v659, %v658
        %v676 = vunpack.c.l.b16 %v660
        %v677 = vunpack.c.h.b16 %v660
        %v678 = vunpack.c.l.b16 %v661
        %v679 = vunpack.c.h.b16 %v661
        %v680 = vunpack.c.l.b16 %v662
        %v681 = vunpack.c.h.b16 %v662
        %v682 = vunpack.c.l.b16 %v663
        %v683 = vunpack.c.h.b16 %v663
        %v684 = vunpack.c.l.b16 %v664
        %v685 = vunpack.c.h.b16 %v664
        %v686 = vunpack.c.l.b16 %v665
        %v687 = vunpack.c.h.b16 %v665
        %v688 = vunpack.c.l.b16 %v666
        %v689 = vunpack.c.h.b16 %v666
        %v690 = vunpack.c.l.b16 %v667
        %v691 = vunpack.c.h.b16 %v667
        %v692 = vpack.c.b16 %v676, %v676
        %v693 = vpack.c.b16 %v677, %v677
        %v694 = vpack.c.b16 %v678, %v678
        %v695 = vpack.c.b16 %v679, %v679
        %v696 = vpack.c.b16 %v680, %v680
        %v697 = vpack.c.b16 %v681, %v681
        %v698 = vpack.c.b16 %v682, %v682
        %v699 = vpack.c.b16 %v683, %v683
        %v700 = vpack.c.b16 %v684, %v684
        %v701 = vpack.c.b16 %v685, %v685
        %v702 = vpack.c.b16 %v686, %v686
        %v703 = vpack.c.b16 %v687, %v687
        %v704 = vpack.c.b16 %v688, %v688
        %v705 = vpack.c.b16 %v689, %v689
        %v706 = vpack.c.b16 %v690, %v690
        %v707 = vpack.c.b16 %v691, %v691
        %vm724 = vcmask 257024
        %725 = vst.msk [vmem:[%s203] sm:$0xf] %vm724, %v692
        %726 = vst.msk [vmem:[%s203 + $0x4] sm:$0xf] %vm724, %v693
        %727 = vst.msk [vmem:[%s203 + $0x8] sm:$0xf] %vm724, %v694
        %728 = vst.msk [vmem:[%s203 + $0xc] sm:$0xf] %vm724, %v695
        %729 = vst.msk [vmem:[%s203 + $0x10] sm:$0xf] %vm724, %v696
        %730 = vst.msk [vmem:[%s203 + $0x14] sm:$0xf] %vm724, %v697
        %731 = vst.msk [vmem:[%s203 + $0x18] sm:$0xf] %vm724, %v698
        %732 = vst.msk [vmem:[%s203 + $0x1c] sm:$0xf] %vm724, %v699
        %733 = vst.msk [vmem:[%s203 + $0x20] sm:$0xf] %vm724, %v700
        %734 = vst.msk [vmem:[%s203 + $0x24] sm:$0xf] %vm724, %v701
        %735 = vst.msk [vmem:[%s203 + $0x28] sm:$0xf] %vm724, %v702
        %736 = vst.msk [vmem:[%s203 + $0x2c] sm:$0xf] %vm724, %v703
        %737 = vst.msk [vmem:[%s203 + $0x30] sm:$0xf] %vm724, %v704
        %738 = vst.msk [vmem:[%s203 + $0x34] sm:$0xf] %vm724, %v705
        %739 = vst.msk [vmem:[%s203 + $0x38] sm:$0xf] %vm724, %v706
        %740 = vst.msk [vmem:[%s203 + $0x3c] sm:$0xf] %vm724, %v707
      $region40: #{_lambda_.4} parent=31 // pred_fallthru
        _
      %s741 = smul.u32 16, %s18
      %p742 = scmp.lt.s32.totalorder %s741, 31
      %s743 = scalar_select %p742, %s741, 31
      %s744 = smul.addr %s743, 4
      %s745 = scalar_lea.vmem %s3, %s744
      // Predicated region
      $region41: #{_lambda_.4} parent=31 // pred_check
        %p746 = pneg %p114
      $region42: #{_lambda_.4} parent=31 // pred_check_branch
        %748 = sbr.rel (%p746) target = $region44
      $region43: #{_lambda_.4} parent=31 // pred_region
        %s749 = smul.u32 16, %s18
      $region44: #{_lambda_.4} parent=31 // pred_fallthru
        _
    $region32: #{_lambda_.4} parent=5 // pred_fallthru
      _
    %p750 = scmp.le.s32.totalorder 2, %s9
    // Predicated region
    $region45: #{_lambda_.4} parent=5 // pred_check
      %p751 = pneg %p750
    $region46: #{_lambda_.4} parent=5 // pred_check_branch
      %753 = sbr.rel (%p751) target = $region48
    $region47: #{_lambda_.4} parent=5 // pred_region
      %s754 = ssub.s32 %s9, 2
      // Predicated region
      $region49: #{_lambda_.4} parent=47 // pred_check
        %p755 = pneg %p120
      $region50: #{_lambda_.4} parent=47 // pred_check_branch
        %757 = sbr.rel (%p755) target = $region52
      $region51: #{_lambda_.4} parent=47 // pred_region
        %s758 = smul.u32 16, %s20
        %p759 = scmp.lt.s32.totalorder %s758, 31
        %s760 = scalar_select %p759, %s758, 31
        %s761 = smul.addr %s760, 4
        %s762 = scalar_lea.vmem %s3, %s761
      $region52: #{_lambda_.4} parent=47 // pred_fallthru
        _
    $region48: #{_lambda_.4} parent=5 // pred_fallthru
      _
  $region6: #{_lambda_.4} parent=0 // loop_footer
    %s13 = sadd.s32 1, %s9
  $region7: #{_lambda_.4} parent=0 // loop_footer_branch
    %8 = sbr.rel target = $region3
  $region8: #{_lambda_.4} parent=0 // loop_exit
    _

</llo_original>
